<compile_context>
chip_gen: v5e
topology: v5e:2x2
jax: 0.10.0
libtpu: 0.0.40
codegen_flags: <defaults>
</compile_context>

<pallas_src>
import math

import jax
import jax.numpy as jnp
from jax.experimental import pallas as pl
from jax.experimental.pallas import tpu as pltpu

LN_EPS = 1e-5       # torch.nn.LayerNorm default eps
ATTN_EPS = 1e-6     # fast_transformers LinearAttention eps


def _layer_norm(x, gamma, beta):
    """f32 LayerNorm over the last axis (biased variance, like torch)."""
    mu = jnp.mean(x, axis=-1, keepdims=True)
    var = jnp.mean((x - mu) ** 2, axis=-1, keepdims=True)
    return (x - mu) * jax.lax.rsqrt(var + LN_EPS) * gamma + beta


def _phi(t):
    """elu(t) + 1 feature map (overflow-safe: exp only sees t <= 0)."""
    return jnp.where(t > 0, t + 1.0, jnp.exp(jnp.minimum(t, 0.0)))


def encoder_layer_kernel(
    x_ref, mask_ref,
    ln0_g_ref, ln0_b_ref, ln1_g_ref, ln1_b_ref,
    wq_ref, bq_ref, wk_ref, bk_ref, wv_ref, bv_ref, wo_ref, bo_ref,
    w1_ref, b1_ref, w2_ref, b2_ref,
    o_ref,
):
    f32 = jnp.float32
    bf16 = jnp.bfloat16

    Bt, L, E = x_ref.shape

    x = x_ref[...]                         # (Bt, L, E) f32
    x2 = x.reshape(Bt * L, E)              # pack batch rows -> big MXU M dim

    # ---- self-attention block (pre-LN) --------------------------------
    xn = _layer_norm(x2, ln0_g_ref[...], ln0_b_ref[...])            # f32
    xn_b = xn.astype(bf16)

    q = jnp.dot(xn_b, wq_ref[...], preferred_element_type=f32) + bq_ref[...]
    k = jnp.dot(xn_b, wk_ref[...], preferred_element_type=f32) + bk_ref[...]
    v = jnp.dot(xn_b, wv_ref[...], preferred_element_type=f32) + bv_ref[...]

    qp = _phi(q).reshape(Bt, L, E)          # f32 elementwise
    kp = _phi(k).reshape(Bt, L, E)
    v3 = v.reshape(Bt, L, E)

    mask = mask_ref[...]                    # (E, E) f32 block-diagonal head mask
    mask_b = mask.astype(bf16)

    # Linear attention with full-E-width contractions (block-diag head mask).
    outs = []
    for b in range(Bt):                     # Bt is small & static -> unrolled
        Qb = qp[b]                          # (L, E) f32
        Kb = kp[b]
        Vb = v3[b]
        # KV[e, m] = sum_l K[l, e] * V[l, m]
        KV = jax.lax.dot_general(
            Kb.astype(bf16), Vb.astype(bf16),
            (((0,), (0,)), ((), ())),
            preferred_element_type=f32)                              # (E, E)
        Ksum = jnp.sum(Kb, axis=0, keepdims=True)                    # (1, E) f32
        Qb_b = Qb.astype(bf16)
        num = jnp.dot(Qb_b, (mask * KV).astype(bf16),
                      preferred_element_type=f32)                    # (L, E)
        den = jnp.dot((Qb * Ksum).astype(bf16), mask_b,
                      preferred_element_type=f32) + ATTN_EPS         # (L, E)
        outs.append(num * pl.reciprocal(den, approx=True))
    attn = jnp.concatenate(outs, axis=0)                             # (Bt*L, E)

    attn = jnp.dot(attn.astype(bf16), wo_ref[...],
                   preferred_element_type=f32) + bo_ref[...]

    # TODO(synk): residual/attention/relu dropout omitted (inference semantics).
    x1 = x2 + attn

    # ---- FFN block (pre-LN) -------------------------------------------
    xn1 = _layer_norm(x1, ln1_g_ref[...], ln1_b_ref[...])
    h1 = jnp.dot(xn1.astype(bf16), w1_ref[...],
                 preferred_element_type=f32) + b1_ref[...]
    h1 = jnp.maximum(h1, 0.0)
    h2 = jnp.dot(h1.astype(bf16), w2_ref[...],
                 preferred_element_type=f32) + b2_ref[...]

    y = x1 + h2
    o_ref[...] = y.reshape(Bt, L, E).astype(o_ref.dtype)


_WEIGHT_NAMES = ("wq", "wk", "wv", "wo", "w1", "w2")
_PARAM_ORDER = (
    "ln0_g", "ln0_b", "ln1_g", "ln1_b",
    "wq", "bq", "wk", "bk", "wv", "bv", "wo", "bo",
    "w1", "b1", "w2", "b2",
)


def _head_mask(E, num_heads):
    head = jnp.arange(E, dtype=jnp.int32) // (E // num_heads)
    return (head[:, None] == head[None, :]).astype(jnp.float32)


def _pick_block_batch(N, L, target_rows=512):
    divisors = [d for d in range(1, N + 1) if N % d == 0]
    # keep at least 2 grid steps when possible (megacore / dual-TC occupancy)
    cands = [d for d in divisors if N // d >= 2] or divisors
    good = [d for d in cands if d * L <= target_rows]
    return max(good) if good else min(cands)


def _vmem_limit_bytes(Bt, L, E):
    F = 4 * E
    rows = Bt * L
    wbytes = 2 * (4 * E * E + 2 * E * F)           # bf16 weights
    mbytes = 4 * E * E                             # f32 head mask
    iobytes = 2 * 2 * rows * E * 4                 # x/out blocks (double buffered)
    actbytes = 4 * rows * (8 * E + 2 * F) + 4 * 2 * E * E
    est = 2 * (wbytes + mbytes) + iobytes + actbytes + (4 << 20)
    return int(min(64 << 20, max(est, 16 << 20)))  # stay under v7x's 64 MiB VMEM


def transformer_encoder_layer(x, params, num_heads, block_batch=None):
    N, L, E = x.shape
    assert E % num_heads == 0
    Bt = block_batch if block_batch is not None else _pick_block_batch(N, L)
    assert N % Bt == 0
    grid = (N // Bt,)

    mask = _head_mask(E, num_heads)

    def full_spec(shape):
        # Constant-index full-array block: stays resident across grid steps.
        return pl.BlockSpec(shape, lambda n, _nd=len(shape): (0,) * _nd)

    in_specs = [
        pl.BlockSpec((Bt, L, E), lambda n: (n, 0, 0)),
        full_spec(mask.shape),
    ]
    args = [x, mask]
    for name in _PARAM_ORDER:
        p = params[name]
        if name in _WEIGHT_NAMES:
            p = p.astype(jnp.bfloat16)   # bf16 matmul operands, f32 accumulation
        in_specs.append(full_spec(p.shape))
        args.append(p)

    fn = pl.pallas_call(
        encoder_layer_kernel,
        out_shape=jax.ShapeDtypeStruct((N, L, E), jnp.float32),
        grid_spec=pltpu.PrefetchScalarGridSpec(
            num_scalar_prefetch=0,
            grid=grid,
            in_specs=in_specs,
            out_specs=pl.BlockSpec((Bt, L, E), lambda n: (n, 0, 0)),
        ),
        compiler_params=pltpu.CompilerParams(
            dimension_semantics=("parallel",),
            vmem_limit_bytes=_vmem_limit_bytes(Bt, L, E),
        ),
    )
    return fn(*args)


def init_params(key, embed_dim):
    """Deterministic parameter init matching the module's shapes.

    Linear weights are stored pre-transposed as (in, out) so the kernel
    computes x @ W + b (equivalent to torch's x @ W.T + b with W=(out,in)).
    """
    E = embed_dim
    F = 4 * E

    def xavier(k, fan_in, fan_out):
        bound = math.sqrt(6.0 / (fan_in + fan_out))
        return jax.random.uniform(k, (fan_in, fan_out), jnp.float32, -bound, bound)

    keys = jax.random.split(key, 8)
    params = {
        # layer norms
        "ln0_g": jnp.ones((1, E), jnp.float32),
        "ln0_b": jnp.zeros((1, E), jnp.float32),
        "ln1_g": jnp.ones((1, E), jnp.float32),
        "ln1_b": jnp.zeros((1, E), jnp.float32),
        # attention projections (q, k, v, out), all E -> E
        "wq": xavier(keys[0], E, E), "bq": jnp.zeros((1, E), jnp.float32),
        "wk": xavier(keys[1], E, E), "bk": jnp.zeros((1, E), jnp.float32),
        "wv": xavier(keys[2], E, E), "bv": jnp.zeros((1, E), jnp.float32),
        "wo": xavier(keys[3], E, E), "bo": jnp.zeros((1, E), jnp.float32),
        # FFN
        "w1": xavier(keys[4], E, F), "b1": jnp.zeros((1, F), jnp.float32),
        "w2": xavier(keys[5], F, E), "b2": jnp.zeros((1, E), jnp.float32),
    }
    return params


def reference_forward(x, params, num_heads):
    """Pure-JAX f32 reference of the PyTorch layer (inference mode)."""
    E = x.shape[-1]
    Dh = E // num_heads

    def ln(t, g, b):
        mu = jnp.mean(t, -1, keepdims=True)
        var = jnp.mean((t - mu) ** 2, -1, keepdims=True)
        return (t - mu) / jnp.sqrt(var + LN_EPS) * g + b

    residual = x
    xn = ln(x, params["ln0_g"][0], params["ln0_b"][0])
    q = xn @ params["wq"] + params["bq"][0]
    k = xn @ params["wk"] + params["bk"][0]
    v = xn @ params["wv"] + params["bv"][0]

    def split(t):  # (N, L, E) -> (N, H, L, Dh)
        N, L, _ = t.shape
        return t.reshape(N, L, num_heads, Dh).transpose(0, 2, 1, 3)

    Q, K, V = _phi(split(q)), _phi(split(k)), split(v)
    KV = jnp.einsum('nhld,nhlm->nhdm', K, V)
    Ksum = K.sum(axis=2)
    den = jnp.einsum('nhld,nhd->nhl', Q, Ksum) + ATTN_EPS
    out = jnp.einsum('nhld,nhdm->nhlm', Q, KV) / den[..., None]
    attn = out.transpose(0, 2, 1, 3).reshape(x.shape)
    attn = attn @ params["wo"] + params["bo"][0]
    x1 = residual + attn
    xn1 = ln(x1, params["ln1_g"][0], params["ln1_b"][0])
    h = jax.nn.relu(xn1 @ params["w1"] + params["b1"][0])
    h = h @ params["w2"] + params["b2"][0]
    return x1 + h


if __name__ == "__main__":
    N, L, E, H = 4, 16, 32, 4   # batch, seq, embed_dim, num_heads

    key = jax.random.PRNGKey(0)
    kx, kp = jax.random.split(key)
    x = jax.random.normal(kx, (N, L, E), jnp.float32)
    params = init_params(kp, E)

    out = transformer_encoder_layer(x, params, num_heads=H)
    out = jax.block_until_ready(out)
    assert out.shape == (N, L, E) and out.dtype == jnp.float32
    assert bool(jnp.all(jnp.isfinite(out)))

    ref = reference_forward(x, params, H)
    # bf16 matmul operands + approx reciprocal -> loose tolerance
    max_err = float(jnp.max(jnp.abs(out - ref)))
    assert bool(jnp.allclose(out, ref, rtol=1.5e-1, atol=1.5e-1)), max_err

    print("KERNEL_OK")
</pallas_src>

<mosaic_0001>
module attributes {stable_mosaic.version = 11 : i64} {
  func.func @encoder_layer_kernel(%arg0: i32, %arg1: memref<2x16x32xf32, #tpu.memory_space<vmem>>, %arg2: memref<32x32xf32, #tpu.memory_space<vmem>>, %arg3: memref<1x32xf32, #tpu.memory_space<vmem>>, %arg4: memref<1x32xf32, #tpu.memory_space<vmem>>, %arg5: memref<1x32xf32, #tpu.memory_space<vmem>>, %arg6: memref<1x32xf32, #tpu.memory_space<vmem>>, %arg7: memref<32x32xbf16, #tpu.memory_space<vmem>>, %arg8: memref<1x32xf32, #tpu.memory_space<vmem>>, %arg9: memref<32x32xbf16, #tpu.memory_space<vmem>>, %arg10: memref<1x32xf32, #tpu.memory_space<vmem>>, %arg11: memref<32x32xbf16, #tpu.memory_space<vmem>>, %arg12: memref<1x32xf32, #tpu.memory_space<vmem>>, %arg13: memref<32x32xbf16, #tpu.memory_space<vmem>>, %arg14: memref<1x32xf32, #tpu.memory_space<vmem>>, %arg15: memref<32x128xbf16, #tpu.memory_space<vmem>>, %arg16: memref<1x128xf32, #tpu.memory_space<vmem>>, %arg17: memref<128x32xbf16, #tpu.memory_space<vmem>>, %arg18: memref<1x32xf32, #tpu.memory_space<vmem>>, %arg19: memref<2x16x32xf32, #tpu.memory_space<vmem>>) attributes {dimension_semantics = [#tpu.dimension_semantics<parallel>], iteration_bounds = array<i64: 2>, scalar_prefetch = 0 : i64, scratch_operands = 0 : i64, tpu.core_type = #tpu.core_type<tc>, window_params = [{transform_indices = @transform_0, window_bounds = array<i64: 2, 16, 32>}, {pipeline_mode = #tpu.pipeline_mode<synchronous>, transform_indices = @transform_1, window_bounds = array<i64: 32, 32>}, {pipeline_mode = #tpu.pipeline_mode<synchronous>, transform_indices = @transform_2, window_bounds = array<i64: 1, 32>}, {pipeline_mode = #tpu.pipeline_mode<synchronous>, transform_indices = @transform_3, window_bounds = array<i64: 1, 32>}, {pipeline_mode = #tpu.pipeline_mode<synchronous>, transform_indices = @transform_4, window_bounds = array<i64: 1, 32>}, {pipeline_mode = #tpu.pipeline_mode<synchronous>, transform_indices = @transform_5, window_bounds = array<i64: 1, 32>}, {pipeline_mode = #tpu.pipeline_mode<synchronous>, transform_indices = @transform_6, window_bounds = array<i64: 32, 32>}, {pipeline_mode = #tpu.pipeline_mode<synchronous>, transform_indices = @transform_7, window_bounds = array<i64: 1, 32>}, {pipeline_mode = #tpu.pipeline_mode<synchronous>, transform_indices = @transform_8, window_bounds = array<i64: 32, 32>}, {pipeline_mode = #tpu.pipeline_mode<synchronous>, transform_indices = @transform_9, window_bounds = array<i64: 1, 32>}, {pipeline_mode = #tpu.pipeline_mode<synchronous>, transform_indices = @transform_10, window_bounds = array<i64: 32, 32>}, {pipeline_mode = #tpu.pipeline_mode<synchronous>, transform_indices = @transform_11, window_bounds = array<i64: 1, 32>}, {pipeline_mode = #tpu.pipeline_mode<synchronous>, transform_indices = @transform_12, window_bounds = array<i64: 32, 32>}, {pipeline_mode = #tpu.pipeline_mode<synchronous>, transform_indices = @transform_13, window_bounds = array<i64: 1, 32>}, {pipeline_mode = #tpu.pipeline_mode<synchronous>, transform_indices = @transform_14, window_bounds = array<i64: 32, 128>}, {pipeline_mode = #tpu.pipeline_mode<synchronous>, transform_indices = @transform_15, window_bounds = array<i64: 1, 128>}, {pipeline_mode = #tpu.pipeline_mode<synchronous>, transform_indices = @transform_16, window_bounds = array<i64: 128, 32>}, {pipeline_mode = #tpu.pipeline_mode<synchronous>, transform_indices = @transform_17, window_bounds = array<i64: 1, 32>}, {transform_indices = @transform_18, window_bounds = array<i64: 2, 16, 32>}]} {
    %c0 = arith.constant 0 : index
    %c0_0 = arith.constant 0 : index
    %c0_1 = arith.constant 0 : index
    %0 = vector.load %arg1[%c0, %c0_0, %c0_1] : memref<2x16x32xf32, #tpu.memory_space<vmem>>, vector<2x16x32xf32>
    %1 = vector.shape_cast %0 : vector<2x16x32xf32> to vector<32x32xf32>
    %c0_2 = arith.constant 0 : index
    %c0_3 = arith.constant 0 : index
    %2 = vector.load %arg3[%c0_2, %c0_3] : memref<1x32xf32, #tpu.memory_space<vmem>>, vector<1x32xf32>
    %c0_4 = arith.constant 0 : index
    %c0_5 = arith.constant 0 : index
    %3 = vector.load %arg4[%c0_4, %c0_5] : memref<1x32xf32, #tpu.memory_space<vmem>>, vector<1x32xf32>
    %cst = arith.constant dense<0.000000e+00> : vector<32xf32>
    %4 = vector.multi_reduction <add>, %1, %cst [1] : vector<32x32xf32> to vector<32xf32>
    %5 = vector.shape_cast %4 : vector<32xf32> to vector<32x1xf32>
    %cst_6 = arith.constant 3.200000e+01 : f32
    %6 = vector.broadcast %cst_6 : f32 to vector<32x1xf32>
    %7 = arith.divf %5, %6 : vector<32x1xf32>
    %8 = vector.broadcast %7 : vector<32x1xf32> to vector<32x32xf32>
    %9 = arith.subf %1, %8 : vector<32x32xf32>
    %10 = arith.mulf %9, %9 : vector<32x32xf32>
    %cst_7 = arith.constant dense<0.000000e+00> : vector<32xf32>
    %11 = vector.multi_reduction <add>, %10, %cst_7 [1] : vector<32x32xf32> to vector<32xf32>
    %12 = vector.shape_cast %11 : vector<32xf32> to vector<32x1xf32>
    %cst_8 = arith.constant 3.200000e+01 : f32
    %13 = vector.broadcast %cst_8 : f32 to vector<32x1xf32>
    %14 = arith.divf %12, %13 : vector<32x1xf32>
    %15 = vector.broadcast %7 : vector<32x1xf32> to vector<32x32xf32>
    %16 = arith.subf %1, %15 : vector<32x32xf32>
    %cst_9 = arith.constant 9.99999974E-6 : f32
    %17 = vector.broadcast %cst_9 : f32 to vector<32x1xf32>
    %18 = arith.addf %14, %17 : vector<32x1xf32>
    %19 = math.rsqrt %18 : vector<32x1xf32>
    %20 = vector.broadcast %19 : vector<32x1xf32> to vector<32x32xf32>
    %21 = arith.mulf %16, %20 : vector<32x32xf32>
    %22 = vector.broadcast %2 : vector<1x32xf32> to vector<32x32xf32>
    %23 = arith.mulf %21, %22 : vector<32x32xf32>
    %24 = vector.broadcast %3 : vector<1x32xf32> to vector<32x32xf32>
    %25 = arith.addf %23, %24 : vector<32x32xf32>
    %26 = arith.truncf %25 : vector<32x32xf32> to vector<32x32xbf16>
    %c0_10 = arith.constant 0 : index
    %c0_11 = arith.constant 0 : index
    %27 = vector.load %arg7[%c0_10, %c0_11] : memref<32x32xbf16, #tpu.memory_space<vmem>>, vector<32x32xbf16>
    %cst_12 = arith.constant dense<0.000000e+00> : vector<32x32xf32>
    %28 = tpu.matmul %26, %27, %cst_12 {dimension_numbers = #tpu.dot_dimension_numbers<[1], [0], [0], [1], [0, 0, 1, 1], [], []>} : vector<32x32xbf16>, vector<32x32xbf16>, vector<32x32xf32> -> vector<32x32xf32>
    %c0_13 = arith.constant 0 : index
    %c0_14 = arith.constant 0 : index
    %29 = vector.load %arg8[%c0_13, %c0_14] : memref<1x32xf32, #tpu.memory_space<vmem>>, vector<1x32xf32>
    %30 = vector.broadcast %29 : vector<1x32xf32> to vector<32x32xf32>
    %31 = arith.addf %28, %30 : vector<32x32xf32>
    %c0_15 = arith.constant 0 : index
    %c0_16 = arith.constant 0 : index
    %32 = vector.load %arg9[%c0_15, %c0_16] : memref<32x32xbf16, #tpu.memory_space<vmem>>, vector<32x32xbf16>
    %cst_17 = arith.constant dense<0.000000e+00> : vector<32x32xf32>
    %33 = tpu.matmul %26, %32, %cst_17 {dimension_numbers = #tpu.dot_dimension_numbers<[1], [0], [0], [1], [0, 0, 1, 1], [], []>} : vector<32x32xbf16>, vector<32x32xbf16>, vector<32x32xf32> -> vector<32x32xf32>
    %c0_18 = arith.constant 0 : index
    %c0_19 = arith.constant 0 : index
    %34 = vector.load %arg10[%c0_18, %c0_19] : memref<1x32xf32, #tpu.memory_space<vmem>>, vector<1x32xf32>
    %35 = vector.broadcast %34 : vector<1x32xf32> to vector<32x32xf32>
    %36 = arith.addf %33, %35 : vector<32x32xf32>
    %c0_20 = arith.constant 0 : index
    %c0_21 = arith.constant 0 : index
    %37 = vector.load %arg11[%c0_20, %c0_21] : memref<32x32xbf16, #tpu.memory_space<vmem>>, vector<32x32xbf16>
    %cst_22 = arith.constant dense<0.000000e+00> : vector<32x32xf32>
    %38 = tpu.matmul %26, %37, %cst_22 {dimension_numbers = #tpu.dot_dimension_numbers<[1], [0], [0], [1], [0, 0, 1, 1], [], []>} : vector<32x32xbf16>, vector<32x32xbf16>, vector<32x32xf32> -> vector<32x32xf32>
    %c0_23 = arith.constant 0 : index
    %c0_24 = arith.constant 0 : index
    %39 = vector.load %arg12[%c0_23, %c0_24] : memref<1x32xf32, #tpu.memory_space<vmem>>, vector<1x32xf32>
    %40 = vector.broadcast %39 : vector<1x32xf32> to vector<32x32xf32>
    %41 = arith.addf %38, %40 : vector<32x32xf32>
    %cst_25 = arith.constant 0.000000e+00 : f32
    %42 = vector.broadcast %cst_25 : f32 to vector<32x32xf32>
    %43 = arith.cmpf ogt, %31, %42 : vector<32x32xf32>
    %cst_26 = arith.constant 1.000000e+00 : f32
    %44 = vector.broadcast %cst_26 : f32 to vector<32x32xf32>
    %45 = arith.addf %31, %44 : vector<32x32xf32>
    %cst_27 = arith.constant 0.000000e+00 : f32
    %46 = vector.broadcast %cst_27 : f32 to vector<32x32xf32>
    %47 = arith.minimumf %31, %46 : vector<32x32xf32>
    %48 = math.exp %47 : vector<32x32xf32>
    %49 = arith.select %43, %45, %48 : vector<32x32xi1>, vector<32x32xf32>
    %50 = vector.shape_cast %49 : vector<32x32xf32> to vector<2x16x32xf32>
    %cst_28 = arith.constant 0.000000e+00 : f32
    %51 = vector.broadcast %cst_28 : f32 to vector<32x32xf32>
    %52 = arith.cmpf ogt, %36, %51 : vector<32x32xf32>
    %cst_29 = arith.constant 1.000000e+00 : f32
    %53 = vector.broadcast %cst_29 : f32 to vector<32x32xf32>
    %54 = arith.addf %36, %53 : vector<32x32xf32>
    %cst_30 = arith.constant 0.000000e+00 : f32
    %55 = vector.broadcast %cst_30 : f32 to vector<32x32xf32>
    %56 = arith.minimumf %36, %55 : vector<32x32xf32>
    %57 = math.exp %56 : vector<32x32xf32>
    %58 = arith.select %52, %54, %57 : vector<32x32xi1>, vector<32x32xf32>
    %59 = vector.shape_cast %58 : vector<32x32xf32> to vector<2x16x32xf32>
    %60 = vector.shape_cast %41 : vector<32x32xf32> to vector<2x16x32xf32>
    %c0_31 = arith.constant 0 : index
    %c0_32 = arith.constant 0 : index
    %61 = vector.load %arg2[%c0_31, %c0_32] : memref<32x32xf32, #tpu.memory_space<vmem>>, vector<32x32xf32>
    %62 = arith.truncf %61 : vector<32x32xf32> to vector<32x32xbf16>
    %63 = vector.extract_strided_slice %50 {offsets = [0, 0, 0], sizes = [1, 16, 32], strides = [1, 1, 1]} : vector<2x16x32xf32> to vector<1x16x32xf32>
    %64 = vector.shape_cast %63 : vector<1x16x32xf32> to vector<16x32xf32>
    %65 = vector.extract_strided_slice %59 {offsets = [0, 0, 0], sizes = [1, 16, 32], strides = [1, 1, 1]} : vector<2x16x32xf32> to vector<1x16x32xf32>
    %66 = vector.shape_cast %65 : vector<1x16x32xf32> to vector<16x32xf32>
    %67 = vector.extract_strided_slice %60 {offsets = [0, 0, 0], sizes = [1, 16, 32], strides = [1, 1, 1]} : vector<2x16x32xf32> to vector<1x16x32xf32>
    %68 = vector.shape_cast %67 : vector<1x16x32xf32> to vector<16x32xf32>
    %69 = arith.truncf %66 : vector<16x32xf32> to vector<16x32xbf16>
    %70 = arith.truncf %68 : vector<16x32xf32> to vector<16x32xbf16>
    %cst_33 = arith.constant dense<0.000000e+00> : vector<32x32xf32>
    %71 = tpu.matmul %69, %70, %cst_33 {dimension_numbers = #tpu.dot_dimension_numbers<[0], [0], [1], [1], [0, 1, 1, 1], [], []>} : vector<16x32xbf16>, vector<16x32xbf16>, vector<32x32xf32> -> vector<32x32xf32>
    %cst_34 = arith.constant dense<0.000000e+00> : vector<32xf32>
    %72 = vector.multi_reduction <add>, %66, %cst_34 [0] : vector<16x32xf32> to vector<32xf32>
    %73 = vector.shape_cast %72 : vector<32xf32> to vector<1x32xf32>
    %74 = arith.truncf %64 : vector<16x32xf32> to vector<16x32xbf16>
    %75 = arith.mulf %61, %71 : vector<32x32xf32>
    %76 = arith.truncf %75 : vector<32x32xf32> to vector<32x32xbf16>
    %cst_35 = arith.constant dense<0.000000e+00> : vector<16x32xf32>
    %77 = tpu.matmul %74, %76, %cst_35 {dimension_numbers = #tpu.dot_dimension_numbers<[1], [0], [0], [1], [0, 0, 1, 1], [], []>} : vector<16x32xbf16>, vector<32x32xbf16>, vector<16x32xf32> -> vector<16x32xf32>
    %78 = vector.broadcast %73 : vector<1x32xf32> to vector<16x32xf32>
    %79 = arith.mulf %64, %78 : vector<16x32xf32>
    %80 = arith.truncf %79 : vector<16x32xf32> to vector<16x32xbf16>
    %cst_36 = arith.constant dense<0.000000e+00> : vector<16x32xf32>
    %81 = tpu.matmul %80, %62, %cst_36 {dimension_numbers = #tpu.dot_dimension_numbers<[1], [0], [0], [1], [0, 0, 1, 1], [], []>} : vector<16x32xbf16>, vector<32x32xbf16>, vector<16x32xf32> -> vector<16x32xf32>
    %cst_37 = arith.constant 9.99999997E-7 : f32
    %82 = vector.broadcast %cst_37 : f32 to vector<16x32xf32>
    %83 = arith.addf %81, %82 : vector<16x32xf32>
    %84 = tpu.reciprocal %83 {approx = true} : vector<16x32xf32> -> vector<16x32xf32>
    %85 = arith.mulf %77, %84 : vector<16x32xf32>
    %86 = vector.extract_strided_slice %50 {offsets = [1, 0, 0], sizes = [1, 16, 32], strides = [1, 1, 1]} : vector<2x16x32xf32> to vector<1x16x32xf32>
    %87 = vector.shape_cast %86 : vector<1x16x32xf32> to vector<16x32xf32>
    %88 = vector.extract_strided_slice %59 {offsets = [1, 0, 0], sizes = [1, 16, 32], strides = [1, 1, 1]} : vector<2x16x32xf32> to vector<1x16x32xf32>
    %89 = vector.shape_cast %88 : vector<1x16x32xf32> to vector<16x32xf32>
    %90 = vector.extract_strided_slice %60 {offsets = [1, 0, 0], sizes = [1, 16, 32], strides = [1, 1, 1]} : vector<2x16x32xf32> to vector<1x16x32xf32>
    %91 = vector.shape_cast %90 : vector<1x16x32xf32> to vector<16x32xf32>
    %92 = arith.truncf %89 : vector<16x32xf32> to vector<16x32xbf16>
    %93 = arith.truncf %91 : vector<16x32xf32> to vector<16x32xbf16>
    %cst_38 = arith.constant dense<0.000000e+00> : vector<32x32xf32>
    %94 = tpu.matmul %92, %93, %cst_38 {dimension_numbers = #tpu.dot_dimension_numbers<[0], [0], [1], [1], [0, 1, 1, 1], [], []>} : vector<16x32xbf16>, vector<16x32xbf16>, vector<32x32xf32> -> vector<32x32xf32>
    %cst_39 = arith.constant dense<0.000000e+00> : vector<32xf32>
    %95 = vector.multi_reduction <add>, %89, %cst_39 [0] : vector<16x32xf32> to vector<32xf32>
    %96 = vector.shape_cast %95 : vector<32xf32> to vector<1x32xf32>
    %97 = arith.truncf %87 : vector<16x32xf32> to vector<16x32xbf16>
    %98 = arith.mulf %61, %94 : vector<32x32xf32>
    %99 = arith.truncf %98 : vector<32x32xf32> to vector<32x32xbf16>
    %cst_40 = arith.constant dense<0.000000e+00> : vector<16x32xf32>
    %100 = tpu.matmul %97, %99, %cst_40 {dimension_numbers = #tpu.dot_dimension_numbers<[1], [0], [0], [1], [0, 0, 1, 1], [], []>} : vector<16x32xbf16>, vector<32x32xbf16>, vector<16x32xf32> -> vector<16x32xf32>
    %101 = vector.broadcast %96 : vector<1x32xf32> to vector<16x32xf32>
    %102 = arith.mulf %87, %101 : vector<16x32xf32>
    %103 = arith.truncf %102 : vector<16x32xf32> to vector<16x32xbf16>
    %cst_41 = arith.constant dense<0.000000e+00> : vector<16x32xf32>
    %104 = tpu.matmul %103, %62, %cst_41 {dimension_numbers = #tpu.dot_dimension_numbers<[1], [0], [0], [1], [0, 0, 1, 1], [], []>} : vector<16x32xbf16>, vector<32x32xbf16>, vector<16x32xf32> -> vector<16x32xf32>
    %cst_42 = arith.constant 9.99999997E-7 : f32
    %105 = vector.broadcast %cst_42 : f32 to vector<16x32xf32>
    %106 = arith.addf %104, %105 : vector<16x32xf32>
    %107 = tpu.reciprocal %106 {approx = true} : vector<16x32xf32> -> vector<16x32xf32>
    %108 = arith.mulf %100, %107 : vector<16x32xf32>
    %109 = tpu.concatenate %85, %108 in 0 : vector<16x32xf32>, vector<16x32xf32> -> vector<32x32xf32>
    %110 = arith.truncf %109 : vector<32x32xf32> to vector<32x32xbf16>
    %c0_43 = arith.constant 0 : index
    %c0_44 = arith.constant 0 : index
    %111 = vector.load %arg13[%c0_43, %c0_44] : memref<32x32xbf16, #tpu.memory_space<vmem>>, vector<32x32xbf16>
    %cst_45 = arith.constant dense<0.000000e+00> : vector<32x32xf32>
    %112 = tpu.matmul %110, %111, %cst_45 {dimension_numbers = #tpu.dot_dimension_numbers<[1], [0], [0], [1], [0, 0, 1, 1], [], []>} : vector<32x32xbf16>, vector<32x32xbf16>, vector<32x32xf32> -> vector<32x32xf32>
    %c0_46 = arith.constant 0 : index
    %c0_47 = arith.constant 0 : index
    %113 = vector.load %arg14[%c0_46, %c0_47] : memref<1x32xf32, #tpu.memory_space<vmem>>, vector<1x32xf32>
    %114 = vector.broadcast %113 : vector<1x32xf32> to vector<32x32xf32>
    %115 = arith.addf %112, %114 : vector<32x32xf32>
    %116 = arith.addf %1, %115 : vector<32x32xf32>
    %c0_48 = arith.constant 0 : index
    %c0_49 = arith.constant 0 : index
    %117 = vector.load %arg5[%c0_48, %c0_49] : memref<1x32xf32, #tpu.memory_space<vmem>>, vector<1x32xf32>
    %c0_50 = arith.constant 0 : index
    %c0_51 = arith.constant 0 : index
    %118 = vector.load %arg6[%c0_50, %c0_51] : memref<1x32xf32, #tpu.memory_space<vmem>>, vector<1x32xf32>
    %cst_52 = arith.constant dense<0.000000e+00> : vector<32xf32>
    %119 = vector.multi_reduction <add>, %116, %cst_52 [1] : vector<32x32xf32> to vector<32xf32>
    %120 = vector.shape_cast %119 : vector<32xf32> to vector<32x1xf32>
    %cst_53 = arith.constant 3.200000e+01 : f32
    %121 = vector.broadcast %cst_53 : f32 to vector<32x1xf32>
    %122 = arith.divf %120, %121 : vector<32x1xf32>
    %123 = vector.broadcast %122 : vector<32x1xf32> to vector<32x32xf32>
    %124 = arith.subf %116, %123 : vector<32x32xf32>
    %125 = arith.mulf %124, %124 : vector<32x32xf32>
    %cst_54 = arith.constant dense<0.000000e+00> : vector<32xf32>
    %126 = vector.multi_reduction <add>, %125, %cst_54 [1] : vector<32x32xf32> to vector<32xf32>
    %127 = vector.shape_cast %126 : vector<32xf32> to vector<32x1xf32>
    %cst_55 = arith.constant 3.200000e+01 : f32
    %128 = vector.broadcast %cst_55 : f32 to vector<32x1xf32>
    %129 = arith.divf %127, %128 : vector<32x1xf32>
    %130 = vector.broadcast %122 : vector<32x1xf32> to vector<32x32xf32>
    %131 = arith.subf %116, %130 : vector<32x32xf32>
    %cst_56 = arith.constant 9.99999974E-6 : f32
    %132 = vector.broadcast %cst_56 : f32 to vector<32x1xf32>
    %133 = arith.addf %129, %132 : vector<32x1xf32>
    %134 = math.rsqrt %133 : vector<32x1xf32>
    %135 = vector.broadcast %134 : vector<32x1xf32> to vector<32x32xf32>
    %136 = arith.mulf %131, %135 : vector<32x32xf32>
    %137 = vector.broadcast %117 : vector<1x32xf32> to vector<32x32xf32>
    %138 = arith.mulf %136, %137 : vector<32x32xf32>
    %139 = vector.broadcast %118 : vector<1x32xf32> to vector<32x32xf32>
    %140 = arith.addf %138, %139 : vector<32x32xf32>
    %141 = arith.truncf %140 : vector<32x32xf32> to vector<32x32xbf16>
    %c0_57 = arith.constant 0 : index
    %c0_58 = arith.constant 0 : index
    %142 = vector.load %arg15[%c0_57, %c0_58] : memref<32x128xbf16, #tpu.memory_space<vmem>>, vector<32x128xbf16>
    %cst_59 = arith.constant dense<0.000000e+00> : vector<32x128xf32>
    %143 = tpu.matmul %141, %142, %cst_59 {dimension_numbers = #tpu.dot_dimension_numbers<[1], [0], [0], [1], [0, 0, 1, 1], [], []>} : vector<32x32xbf16>, vector<32x128xbf16>, vector<32x128xf32> -> vector<32x128xf32>
    %c0_60 = arith.constant 0 : index
    %c0_61 = arith.constant 0 : index
    %144 = vector.load %arg16[%c0_60, %c0_61] : memref<1x128xf32, #tpu.memory_space<vmem>>, vector<1x128xf32>
    %145 = vector.broadcast %144 : vector<1x128xf32> to vector<32x128xf32>
    %146 = arith.addf %143, %145 : vector<32x128xf32>
    %cst_62 = arith.constant 0.000000e+00 : f32
    %147 = vector.broadcast %cst_62 : f32 to vector<32x128xf32>
    %148 = arith.maximumf %146, %147 : vector<32x128xf32>
    %149 = arith.truncf %148 : vector<32x128xf32> to vector<32x128xbf16>
    %c0_63 = arith.constant 0 : index
    %c0_64 = arith.constant 0 : index
    %150 = vector.load %arg17[%c0_63, %c0_64] : memref<128x32xbf16, #tpu.memory_space<vmem>>, vector<128x32xbf16>
    %cst_65 = arith.constant dense<0.000000e+00> : vector<32x32xf32>
    %151 = tpu.matmul %149, %150, %cst_65 {dimension_numbers = #tpu.dot_dimension_numbers<[1], [0], [0], [1], [0, 0, 1, 1], [], []>} : vector<32x128xbf16>, vector<128x32xbf16>, vector<32x32xf32> -> vector<32x32xf32>
    %c0_66 = arith.constant 0 : index
    %c0_67 = arith.constant 0 : index
    %152 = vector.load %arg18[%c0_66, %c0_67] : memref<1x32xf32, #tpu.memory_space<vmem>>, vector<1x32xf32>
    %153 = vector.broadcast %152 : vector<1x32xf32> to vector<32x32xf32>
    %154 = arith.addf %151, %153 : vector<32x32xf32>
    %155 = arith.addf %116, %154 : vector<32x32xf32>
    %156 = vector.shape_cast %155 : vector<32x32xf32> to vector<2x16x32xf32>
    %c0_68 = arith.constant 0 : index
    %c0_69 = arith.constant 0 : index
    %c0_70 = arith.constant 0 : index
    %157 = vector.load %arg19[%c0_68, %c0_69, %c0_70] : memref<2x16x32xf32, #tpu.memory_space<vmem>>, vector<2x16x32xf32>
    tpu.vector_store %arg19[%c0_68, %c0_69, %c0_70], %156 {strides = array<i32>} : memref<2x16x32xf32, #tpu.memory_space<vmem>>, vector<2x16x32xf32>,
    return
  }
  func.func @transform_0(%arg0: i32) -> (i32, i32, i32) {
    %c0_i32 = arith.constant 0 : i32
    %c0_i32_0 = arith.constant 0 : i32
    %c0_i32_1 = arith.constant 0 : i32
    return %arg0, %c0_i32, %c0_i32_0 : i32, i32, i32
  }
  func.func @transform_1(%arg0: i32) -> (i32, i32) {
    %c0_i32 = arith.constant 0 : i32
    %c0_i32_0 = arith.constant 0 : i32
    %c0_i32_1 = arith.constant 0 : i32
    return %c0_i32, %c0_i32_0 : i32, i32
  }
  func.func @transform_2(%arg0: i32) -> (i32, i32) {
    %c0_i32 = arith.constant 0 : i32
    %c0_i32_0 = arith.constant 0 : i32
    %c0_i32_1 = arith.constant 0 : i32
    return %c0_i32, %c0_i32_0 : i32, i32
  }
  func.func @transform_3(%arg0: i32) -> (i32, i32) {
    %c0_i32 = arith.constant 0 : i32
    %c0_i32_0 = arith.constant 0 : i32
    %c0_i32_1 = arith.constant 0 : i32
    return %c0_i32, %c0_i32_0 : i32, i32
  }
  func.func @transform_4(%arg0: i32) -> (i32, i32) {
    %c0_i32 = arith.constant 0 : i32
    %c0_i32_0 = arith.constant 0 : i32
    %c0_i32_1 = arith.constant 0 : i32
    return %c0_i32, %c0_i32_0 : i32, i32
  }
  func.func @transform_5(%arg0: i32) -> (i32, i32) {
    %c0_i32 = arith.constant 0 : i32
    %c0_i32_0 = arith.constant 0 : i32
    %c0_i32_1 = arith.constant 0 : i32
    return %c0_i32, %c0_i32_0 : i32, i32
  }
  func.func @transform_6(%arg0: i32) -> (i32, i32) {
    %c0_i32 = arith.constant 0 : i32
    %c0_i32_0 = arith.constant 0 : i32
    %c0_i32_1 = arith.constant 0 : i32
    return %c0_i32, %c0_i32_0 : i32, i32
  }
  func.func @transform_7(%arg0: i32) -> (i32, i32) {
    %c0_i32 = arith.constant 0 : i32
    %c0_i32_0 = arith.constant 0 : i32
    %c0_i32_1 = arith.constant 0 : i32
    return %c0_i32, %c0_i32_0 : i32, i32
  }
  func.func @transform_8(%arg0: i32) -> (i32, i32) {
    %c0_i32 = arith.constant 0 : i32
    %c0_i32_0 = arith.constant 0 : i32
    %c0_i32_1 = arith.constant 0 : i32
    return %c0_i32, %c0_i32_0 : i32, i32
  }
  func.func @transform_9(%arg0: i32) -> (i32, i32) {
    %c0_i32 = arith.constant 0 : i32
    %c0_i32_0 = arith.constant 0 : i32
    %c0_i32_1 = arith.constant 0 : i32
    return %c0_i32, %c0_i32_0 : i32, i32
  }
  func.func @transform_10(%arg0: i32) -> (i32, i32) {
    %c0_i32 = arith.constant 0 : i32
    %c0_i32_0 = arith.constant 0 : i32
    %c0_i32_1 = arith.constant 0 : i32
    return %c0_i32, %c0_i32_0 : i32, i32
  }
  func.func @transform_11(%arg0: i32) -> (i32, i32) {
    %c0_i32 = arith.constant 0 : i32
    %c0_i32_0 = arith.constant 0 : i32
    %c0_i32_1 = arith.constant 0 : i32
    return %c0_i32, %c0_i32_0 : i32, i32
  }
  func.func @transform_12(%arg0: i32) -> (i32, i32) {
    %c0_i32 = arith.constant 0 : i32
    %c0_i32_0 = arith.constant 0 : i32
    %c0_i32_1 = arith.constant 0 : i32
    return %c0_i32, %c0_i32_0 : i32, i32
  }
  func.func @transform_13(%arg0: i32) -> (i32, i32) {
    %c0_i32 = arith.constant 0 : i32
    %c0_i32_0 = arith.constant 0 : i32
    %c0_i32_1 = arith.constant 0 : i32
    return %c0_i32, %c0_i32_0 : i32, i32
  }
  func.func @transform_14(%arg0: i32) -> (i32, i32) {
    %c0_i32 = arith.constant 0 : i32
    %c0_i32_0 = arith.constant 0 : i32
    %c0_i32_1 = arith.constant 0 : i32
    return %c0_i32, %c0_i32_0 : i32, i32
  }
  func.func @transform_15(%arg0: i32) -> (i32, i32) {
    %c0_i32 = arith.constant 0 : i32
    %c0_i32_0 = arith.constant 0 : i32
    %c0_i32_1 = arith.constant 0 : i32
    return %c0_i32, %c0_i32_0 : i32, i32
  }
  func.func @transform_16(%arg0: i32) -> (i32, i32) {
    %c0_i32 = arith.constant 0 : i32
    %c0_i32_0 = arith.constant 0 : i32
    %c0_i32_1 = arith.constant 0 : i32
    return %c0_i32, %c0_i32_0 : i32, i32
  }
  func.func @transform_17(%arg0: i32) -> (i32, i32) {
    %c0_i32 = arith.constant 0 : i32
    %c0_i32_0 = arith.constant 0 : i32
    %c0_i32_1 = arith.constant 0 : i32
    return %c0_i32, %c0_i32_0 : i32, i32
  }
  func.func @transform_18(%arg0: i32) -> (i32, i32, i32) {
    %c0_i32 = arith.constant 0 : i32
    %c0_i32_0 = arith.constant 0 : i32
    %c0_i32_1 = arith.constant 0 : i32
    return %arg0, %c0_i32, %c0_i32_0 : i32, i32, i32
  }
}

</mosaic_0001>

<llo_original>
// kernel: tpu_custom_call.1
$region0: #{tpu_custom_call.1}
  #allocation0 [shape = 'u32[]', space=smem, size = 0x4, offset = 0x4, fixed_abs, tag = 'smem constant byte address 0x4 - core index']
  #allocation1 [shape = 'u32[72,128]{1,0:T(1,128)}', space=vmem, size = 0x9000, scoped, tag = 'internal scratch']
  %s0 = inlined_call_operand.vmem [shape: f32[4,16,32], index: 0, kind: input, shape index: {}]
  %s1 = inlined_call_operand.hbm [shape: f32[32,32], index: 1, kind: input, shape index: {}]
  %s2 = inlined_call_operand.vmem [shape: f32[1,32], index: 2, kind: input, shape index: {}]
  %s3 = inlined_call_operand.vmem [shape: f32[1,32], index: 3, kind: input, shape index: {}]
  %s4 = inlined_call_operand.vmem [shape: f32[1,32], index: 4, kind: input, shape index: {}]
  %s5 = inlined_call_operand.vmem [shape: f32[1,32], index: 5, kind: input, shape index: {}]
  %s6 = inlined_call_operand.vmem [shape: bf16[32,32], index: 6, kind: input, shape index: {}]
  %s7 = inlined_call_operand.vmem [shape: f32[1,32], index: 7, kind: input, shape index: {}]
  %s8 = inlined_call_operand.hbm [shape: bf16[32,32], index: 8, kind: input, shape index: {}]
  %s9 = inlined_call_operand.vmem [shape: f32[1,32], index: 9, kind: input, shape index: {}]
  %s10 = inlined_call_operand.hbm [shape: bf16[32,32], index: 10, kind: input, shape index: {}]
  %s11 = inlined_call_operand.vmem [shape: f32[1,32], index: 11, kind: input, shape index: {}]
  %s12 = inlined_call_operand.hbm [shape: bf16[32,32], index: 12, kind: input, shape index: {}]
  %s13 = inlined_call_operand.vmem [shape: f32[1,32], index: 13, kind: input, shape index: {}]
  %s14 = inlined_call_operand.hbm [shape: bf16[32,128], index: 14, kind: input, shape index: {}]
  %s15 = inlined_call_operand.vmem [shape: f32[1,128], index: 15, kind: input, shape index: {}]
  %s16 = inlined_call_operand.vmem [shape: bf16[128,32], index: 16, kind: input, shape index: {}]
  %s17 = inlined_call_operand.vmem [shape: f32[1,32], index: 17, kind: input, shape index: {}]
  %s18 = inlined_call_operand.hbm [shape: f32[4,16,32], index: 18, kind: output, shape index: {}]
  %s19 = sld [smem:[#allocation0]]
  $region125: #{tpu_custom_call.1} parent=0
    _
  %s21 = ssub.s32 1, %s19
  %s22 = scalar_select 0, %s21, %s19
  $region1: #{tpu_custom_call.1} parent=0
    #allocation2 [shape = 'u8[16384]{0}', space=vmem, size = 0x4000, scoped, tag = 'input window, operand 1, single buffered']
    #allocation3 [shape = 's32[2]{0}', space=sflag, size = 0x8, scoped, tag = 'scoped memory for tpu_custom_call.1']
    #allocation4 [shape = 's32[2]{0}', space=sflag, size = 0x8, scoped, tag = 'scoped memory for tpu_custom_call.1']
    #allocation5 [shape = 'u8[8192]{0}', space=vmem, size = 0x2000, scoped, tag = 'input window, operand 8, single buffered']
    #allocation6 [shape = 's32[1]{0}', space=sflag, size = 0x4, scoped, tag = 'scoped memory for tpu_custom_call.1']
    #allocation7 [shape = 'u8[8192]{0}', space=vmem, size = 0x2000, scoped, tag = 'input window, operand 10, single buffered']
    #allocation8 [shape = 'u8[8192]{0}', space=vmem, size = 0x2000, scoped, tag = 'input window, operand 12, single buffered']
    #allocation9 [shape = 's32[1]{0}', space=sflag, size = 0x4, scoped, tag = 'scoped memory for tpu_custom_call.1']
    #allocation10 [shape = 'u8[8192]{0}', space=vmem, size = 0x2000, scoped, tag = 'input window, operand 14, single buffered']
    #allocation11 [shape = 'u8[32768]{0}', space=vmem, size = 0x8000, scoped, tag = 'output window, operand 0']
    %23 = vsyncpa [#allocation3], 0
    %24 = vsyncpa [#allocation6], 0
    %25 = vsyncpa [#allocation9], 0
    %26 = vsyncpa [#allocation4], 0
    %s27 = scalar_lea.sflag [#allocation4], 1
    %28 = vsyncpa %s27, 0
    loop: start=0, step=1, limit=4
    $region2: #{tpu_custom_call.1} parent=1 // loop_pre_header
      _
    $region3: #{tpu_custom_call.1} parent=1 // loop_header
      %s30 = sphi 0, %s34
      %p31 = scmp.ge.s32.totalorder %s30, 4
      %s40 = sphi 0, %s42
      %s43 = sphi 0, %s40
      %s44 = sphi 0, %s43
      %s60 = sphi 0, %s44
      %s64 = sphi 0, %s64
      %s66 = sphi 0, %s64
      %s67 = sphi 0, %s66
      %s81 = sphi 0, %s67
      %s85 = sphi 0, %s85
      %s87 = sphi 0, %s85
      %s88 = sphi 0, %s87
      %s102 = sphi 0, %s88
      %s106 = sphi 0, %s106
      %s108 = sphi 0, %s106
      %s109 = sphi 0, %s108
      %s123 = sphi 0, %s109
      %s127 = sphi 0, %s127
      %s129 = sphi 0, %s127
      %s130 = sphi 0, %s129
      %s144 = sphi 0, %s130
      %s148 = sphi 0, %s148
      %s150 = sphi 0, %s148
      %s151 = sphi 0, %s150
      %s165 = sphi 0, %s151
      %s169 = sphi 0, %s169
      %s171 = sphi 0, %s169
      %s172 = sphi 0, %s171
      %s186 = sphi 0, %s172
      %s190 = sphi 0, %s190
      %s192 = sphi 0, %s190
      %s193 = sphi 0, %s192
      %s207 = sphi 0, %s193
      %s211 = sphi 0, %s211
      %s213 = sphi 0, %s211
      %s214 = sphi 0, %s213
      %s228 = sphi 0, %s214
      %s232 = sphi 0, %s232
      %s234 = sphi 0, %s232
      %s235 = sphi 0, %s234
      %s249 = sphi 0, %s235
      %s253 = sphi 0, %s253
      %s255 = sphi 0, %s253
      %s256 = sphi 0, %s255
      %s270 = sphi 0, %s256
      %s274 = sphi 0, %s274
      %s276 = sphi 0, %s274
      %s277 = sphi 0, %s276
      %s291 = sphi 0, %s277
      %s295 = sphi 0, %s295
      %s297 = sphi 0, %s295
      %s298 = sphi 0, %s297
      %s312 = sphi 0, %s298
      %s316 = sphi 0, %s316
      %s318 = sphi 0, %s316
      %s319 = sphi 0, %s318
      %s333 = sphi 0, %s319
      %s337 = sphi 0, %s337
      %s339 = sphi 0, %s337
      %s340 = sphi 0, %s339
      %s354 = sphi 0, %s340
      %s358 = sphi 0, %s358
      %s360 = sphi 0, %s358
      %s361 = sphi 0, %s360
      %s375 = sphi 0, %s361
      %s379 = sphi 0, %s379
      %s381 = sphi 0, %s379
      %s382 = sphi 0, %s381
      %s396 = sphi 0, %s382
      %s400 = sphi 0, %s400
      %s402 = sphi 0, %s400
      %s403 = sphi 0, %s402
      %s417 = sphi 0, %s403
      %s423 = sphi 0, %s425
      %s426 = sphi 0, %s423
      %s427 = sphi 0, %s426
      %s443 = sphi 0, %s427
    $region4: #{tpu_custom_call.1} parent=1 // loop_header_branch
      %33 = sbr.rel (%p31) target = $region8
    $region5: #{tpu_custom_call.1} parent=1 // loop_body
      %s35 = ssub.s32 %s30, 1
      %s36 = ssub.s32 %s30, 2
      %s37 = sadd.s32 %s30, 1
      %s38 = ssub.s32 %s30, %s37
      %p39 = scmp.eq.s32.totalorder %s38, 0
      %s41 = sadd.s32 %s40, 1
      %s42 = scalar_select %p39, %s40, %s41
      %p45 = pneg %p39
      %p46 = scmp.eq.s32.totalorder %s30, 1
      %p47 = por %p45, %p46
      %p48 = scmp.ne.s32.totalorder %s40, %s43
      %p49 = scmp.eq.s32.totalorder %s30, 0
      %p50 = por %p48, %p49
      %p51 = scmp.ne.s32.totalorder %s40, %s43
      %p52 = scmp.eq.s32.totalorder %s35, 1
      %p53 = por %p51, %p52
      %p54 = scmp.ne.s32.totalorder %s43, %s44
      %p55 = scmp.eq.s32.totalorder %s35, 0
      %p56 = por %p54, %p55
      %p57 = scmp.ne.s32.totalorder %s43, %s44
      %p58 = scmp.eq.s32.totalorder %s36, 1
      %p59 = por %p57, %p58
      %p61 = scmp.ne.s32.totalorder %s44, %s60
      %p62 = scmp.eq.s32.totalorder %s36, 0
      %p63 = por %p61, %p62
      %s65 = sadd.s32 %s64, 1
      %p68 = scmp.eq.s32.totalorder %s30, 1
      %p69 = scmp.ne.s32.totalorder %s64, %s66
      %p70 = scmp.eq.s32.totalorder %s30, 0
      %p71 = por %p69, %p70
      %p72 = scmp.ne.s32.totalorder %s64, %s66
      %p73 = scmp.eq.s32.totalorder %s35, 1
      %p74 = por %p72, %p73
      %p75 = scmp.ne.s32.totalorder %s66, %s67
      %p76 = scmp.eq.s32.totalorder %s35, 0
      %p77 = por %p75, %p76
      %p78 = scmp.ne.s32.totalorder %s66, %s67
      %p79 = scmp.eq.s32.totalorder %s36, 1
      %p80 = por %p78, %p79
      %p82 = scmp.ne.s32.totalorder %s67, %s81
      %p83 = scmp.eq.s32.totalorder %s36, 0
      %p84 = por %p82, %p83
      %s86 = sadd.s32 %s85, 1
      %p89 = scmp.eq.s32.totalorder %s30, 1
      %p90 = scmp.ne.s32.totalorder %s85, %s87
      %p91 = scmp.eq.s32.totalorder %s30, 0
      %p92 = por %p90, %p91
      %p93 = scmp.ne.s32.totalorder %s85, %s87
      %p94 = scmp.eq.s32.totalorder %s35, 1
      %p95 = por %p93, %p94
      %p96 = scmp.ne.s32.totalorder %s87, %s88
      %p97 = scmp.eq.s32.totalorder %s35, 0
      %p98 = por %p96, %p97
      %p99 = scmp.ne.s32.totalorder %s87, %s88
      %p100 = scmp.eq.s32.totalorder %s36, 1
      %p101 = por %p99, %p100
      %p103 = scmp.ne.s32.totalorder %s88, %s102
      %p104 = scmp.eq.s32.totalorder %s36, 0
      %p105 = por %p103, %p104
      %s107 = sadd.s32 %s106, 1
      %p110 = scmp.eq.s32.totalorder %s30, 1
      %p111 = scmp.ne.s32.totalorder %s106, %s108
      %p112 = scmp.eq.s32.totalorder %s30, 0
      %p113 = por %p111, %p112
      %p114 = scmp.ne.s32.totalorder %s106, %s108
      %p115 = scmp.eq.s32.totalorder %s35, 1
      %p116 = por %p114, %p115
      %p117 = scmp.ne.s32.totalorder %s108, %s109
      %p118 = scmp.eq.s32.totalorder %s35, 0
      %p119 = por %p117, %p118
      %p120 = scmp.ne.s32.totalorder %s108, %s109
      %p121 = scmp.eq.s32.totalorder %s36, 1
      %p122 = por %p120, %p121
      %p124 = scmp.ne.s32.totalorder %s109, %s123
      %p125 = scmp.eq.s32.totalorder %s36, 0
      %p126 = por %p124, %p125
      %s128 = sadd.s32 %s127, 1
      %p131 = scmp.eq.s32.totalorder %s30, 1
      %p132 = scmp.ne.s32.totalorder %s127, %s129
      %p133 = scmp.eq.s32.totalorder %s30, 0
      %p134 = por %p132, %p133
      %p135 = scmp.ne.s32.totalorder %s127, %s129
      %p136 = scmp.eq.s32.totalorder %s35, 1
      %p137 = por %p135, %p136
      %p138 = scmp.ne.s32.totalorder %s129, %s130
      %p139 = scmp.eq.s32.totalorder %s35, 0
      %p140 = por %p138, %p139
      %p141 = scmp.ne.s32.totalorder %s129, %s130
      %p142 = scmp.eq.s32.totalorder %s36, 1
      %p143 = por %p141, %p142
      %p145 = scmp.ne.s32.totalorder %s130, %s144
      %p146 = scmp.eq.s32.totalorder %s36, 0
      %p147 = por %p145, %p146
      %s149 = sadd.s32 %s148, 1
      %p152 = scmp.eq.s32.totalorder %s30, 1
      %p153 = scmp.ne.s32.totalorder %s148, %s150
      %p154 = scmp.eq.s32.totalorder %s30, 0
      %p155 = por %p153, %p154
      %p156 = scmp.ne.s32.totalorder %s148, %s150
      %p157 = scmp.eq.s32.totalorder %s35, 1
      %p158 = por %p156, %p157
      %p159 = scmp.ne.s32.totalorder %s150, %s151
      %p160 = scmp.eq.s32.totalorder %s35, 0
      %p161 = por %p159, %p160
      %p162 = scmp.ne.s32.totalorder %s150, %s151
      %p163 = scmp.eq.s32.totalorder %s36, 1
      %p164 = por %p162, %p163
      %p166 = scmp.ne.s32.totalorder %s151, %s165
      %p167 = scmp.eq.s32.totalorder %s36, 0
      %p168 = por %p166, %p167
      %s170 = sadd.s32 %s169, 1
      %p173 = scmp.eq.s32.totalorder %s30, 1
      %p174 = scmp.ne.s32.totalorder %s169, %s171
      %p175 = scmp.eq.s32.totalorder %s30, 0
      %p176 = por %p174, %p175
      %p177 = scmp.ne.s32.totalorder %s169, %s171
      %p178 = scmp.eq.s32.totalorder %s35, 1
      %p179 = por %p177, %p178
      %p180 = scmp.ne.s32.totalorder %s171, %s172
      %p181 = scmp.eq.s32.totalorder %s35, 0
      %p182 = por %p180, %p181
      %p183 = scmp.ne.s32.totalorder %s171, %s172
      %p184 = scmp.eq.s32.totalorder %s36, 1
      %p185 = por %p183, %p184
      %p187 = scmp.ne.s32.totalorder %s172, %s186
      %p188 = scmp.eq.s32.totalorder %s36, 0
      %p189 = por %p187, %p188
      %s191 = sadd.s32 %s190, 1
      %p194 = scmp.eq.s32.totalorder %s30, 1
      %p195 = scmp.ne.s32.totalorder %s190, %s192
      %p196 = scmp.eq.s32.totalorder %s30, 0
      %p197 = por %p195, %p196
      %p198 = scmp.ne.s32.totalorder %s190, %s192
      %p199 = scmp.eq.s32.totalorder %s35, 1
      %p200 = por %p198, %p199
      %p201 = scmp.ne.s32.totalorder %s192, %s193
      %p202 = scmp.eq.s32.totalorder %s35, 0
      %p203 = por %p201, %p202
      %p204 = scmp.ne.s32.totalorder %s192, %s193
      %p205 = scmp.eq.s32.totalorder %s36, 1
      %p206 = por %p204, %p205
      %p208 = scmp.ne.s32.totalorder %s193, %s207
      %p209 = scmp.eq.s32.totalorder %s36, 0
      %p210 = por %p208, %p209
      %s212 = sadd.s32 %s211, 1
      %p215 = scmp.eq.s32.totalorder %s30, 1
      %p216 = scmp.ne.s32.totalorder %s211, %s213
      %p217 = scmp.eq.s32.totalorder %s30, 0
      %p218 = por %p216, %p217
      %p219 = scmp.ne.s32.totalorder %s211, %s213
      %p220 = scmp.eq.s32.totalorder %s35, 1
      %p221 = por %p219, %p220
      %p222 = scmp.ne.s32.totalorder %s213, %s214
      %p223 = scmp.eq.s32.totalorder %s35, 0
      %p224 = por %p222, %p223
      %p225 = scmp.ne.s32.totalorder %s213, %s214
      %p226 = scmp.eq.s32.totalorder %s36, 1
      %p227 = por %p225, %p226
      %p229 = scmp.ne.s32.totalorder %s214, %s228
      %p230 = scmp.eq.s32.totalorder %s36, 0
      %p231 = por %p229, %p230
      %s233 = sadd.s32 %s232, 1
      %p236 = scmp.eq.s32.totalorder %s30, 1
      %p237 = scmp.ne.s32.totalorder %s232, %s234
      %p238 = scmp.eq.s32.totalorder %s30, 0
      %p239 = por %p237, %p238
      %p240 = scmp.ne.s32.totalorder %s232, %s234
      %p241 = scmp.eq.s32.totalorder %s35, 1
      %p242 = por %p240, %p241
      %p243 = scmp.ne.s32.totalorder %s234, %s235
      %p244 = scmp.eq.s32.totalorder %s35, 0
      %p245 = por %p243, %p244
      %p246 = scmp.ne.s32.totalorder %s234, %s235
      %p247 = scmp.eq.s32.totalorder %s36, 1
      %p248 = por %p246, %p247
      %p250 = scmp.ne.s32.totalorder %s235, %s249
      %p251 = scmp.eq.s32.totalorder %s36, 0
      %p252 = por %p250, %p251
      %s254 = sadd.s32 %s253, 1
      %p257 = scmp.eq.s32.totalorder %s30, 1
      %p258 = scmp.ne.s32.totalorder %s253, %s255
      %p259 = scmp.eq.s32.totalorder %s30, 0
      %p260 = por %p258, %p259
      %p261 = scmp.ne.s32.totalorder %s253, %s255
      %p262 = scmp.eq.s32.totalorder %s35, 1
      %p263 = por %p261, %p262
      %p264 = scmp.ne.s32.totalorder %s255, %s256
      %p265 = scmp.eq.s32.totalorder %s35, 0
      %p266 = por %p264, %p265
      %p267 = scmp.ne.s32.totalorder %s255, %s256
      %p268 = scmp.eq.s32.totalorder %s36, 1
      %p269 = por %p267, %p268
      %p271 = scmp.ne.s32.totalorder %s256, %s270
      %p272 = scmp.eq.s32.totalorder %s36, 0
      %p273 = por %p271, %p272
      %s275 = sadd.s32 %s274, 1
      %p278 = scmp.eq.s32.totalorder %s30, 1
      %p279 = scmp.ne.s32.totalorder %s274, %s276
      %p280 = scmp.eq.s32.totalorder %s30, 0
      %p281 = por %p279, %p280
      %p282 = scmp.ne.s32.totalorder %s274, %s276
      %p283 = scmp.eq.s32.totalorder %s35, 1
      %p284 = por %p282, %p283
      %p285 = scmp.ne.s32.totalorder %s276, %s277
      %p286 = scmp.eq.s32.totalorder %s35, 0
      %p287 = por %p285, %p286
      %p288 = scmp.ne.s32.totalorder %s276, %s277
      %p289 = scmp.eq.s32.totalorder %s36, 1
      %p290 = por %p288, %p289
      %p292 = scmp.ne.s32.totalorder %s277, %s291
      %p293 = scmp.eq.s32.totalorder %s36, 0
      %p294 = por %p292, %p293
      %s296 = sadd.s32 %s295, 1
      %p299 = scmp.eq.s32.totalorder %s30, 1
      %p300 = scmp.ne.s32.totalorder %s295, %s297
      %p301 = scmp.eq.s32.totalorder %s30, 0
      %p302 = por %p300, %p301
      %p303 = scmp.ne.s32.totalorder %s295, %s297
      %p304 = scmp.eq.s32.totalorder %s35, 1
      %p305 = por %p303, %p304
      %p306 = scmp.ne.s32.totalorder %s297, %s298
      %p307 = scmp.eq.s32.totalorder %s35, 0
      %p308 = por %p306, %p307
      %p309 = scmp.ne.s32.totalorder %s297, %s298
      %p310 = scmp.eq.s32.totalorder %s36, 1
      %p311 = por %p309, %p310
      %p313 = scmp.ne.s32.totalorder %s298, %s312
      %p314 = scmp.eq.s32.totalorder %s36, 0
      %p315 = por %p313, %p314
      %s317 = sadd.s32 %s316, 1
      %p320 = scmp.eq.s32.totalorder %s30, 1
      %p321 = scmp.ne.s32.totalorder %s316, %s318
      %p322 = scmp.eq.s32.totalorder %s30, 0
      %p323 = por %p321, %p322
      %p324 = scmp.ne.s32.totalorder %s316, %s318
      %p325 = scmp.eq.s32.totalorder %s35, 1
      %p326 = por %p324, %p325
      %p327 = scmp.ne.s32.totalorder %s318, %s319
      %p328 = scmp.eq.s32.totalorder %s35, 0
      %p329 = por %p327, %p328
      %p330 = scmp.ne.s32.totalorder %s318, %s319
      %p331 = scmp.eq.s32.totalorder %s36, 1
      %p332 = por %p330, %p331
      %p334 = scmp.ne.s32.totalorder %s319, %s333
      %p335 = scmp.eq.s32.totalorder %s36, 0
      %p336 = por %p334, %p335
      %s338 = sadd.s32 %s337, 1
      %p341 = scmp.eq.s32.totalorder %s30, 1
      %p342 = scmp.ne.s32.totalorder %s337, %s339
      %p343 = scmp.eq.s32.totalorder %s30, 0
      %p344 = por %p342, %p343
      %p345 = scmp.ne.s32.totalorder %s337, %s339
      %p346 = scmp.eq.s32.totalorder %s35, 1
      %p347 = por %p345, %p346
      %p348 = scmp.ne.s32.totalorder %s339, %s340
      %p349 = scmp.eq.s32.totalorder %s35, 0
      %p350 = por %p348, %p349
      %p351 = scmp.ne.s32.totalorder %s339, %s340
      %p352 = scmp.eq.s32.totalorder %s36, 1
      %p353 = por %p351, %p352
      %p355 = scmp.ne.s32.totalorder %s340, %s354
      %p356 = scmp.eq.s32.totalorder %s36, 0
      %p357 = por %p355, %p356
      %s359 = sadd.s32 %s358, 1
      %p362 = scmp.eq.s32.totalorder %s30, 1
      %p363 = scmp.ne.s32.totalorder %s358, %s360
      %p364 = scmp.eq.s32.totalorder %s30, 0
      %p365 = por %p363, %p364
      %p366 = scmp.ne.s32.totalorder %s358, %s360
      %p367 = scmp.eq.s32.totalorder %s35, 1
      %p368 = por %p366, %p367
      %p369 = scmp.ne.s32.totalorder %s360, %s361
      %p370 = scmp.eq.s32.totalorder %s35, 0
      %p371 = por %p369, %p370
      %p372 = scmp.ne.s32.totalorder %s360, %s361
      %p373 = scmp.eq.s32.totalorder %s36, 1
      %p374 = por %p372, %p373
      %p376 = scmp.ne.s32.totalorder %s361, %s375
      %p377 = scmp.eq.s32.totalorder %s36, 0
      %p378 = por %p376, %p377
      %s380 = sadd.s32 %s379, 1
      %p383 = scmp.eq.s32.totalorder %s30, 1
      %p384 = scmp.ne.s32.totalorder %s379, %s381
      %p385 = scmp.eq.s32.totalorder %s30, 0
      %p386 = por %p384, %p385
      %p387 = scmp.ne.s32.totalorder %s379, %s381
      %p388 = scmp.eq.s32.totalorder %s35, 1
      %p389 = por %p387, %p388
      %p390 = scmp.ne.s32.totalorder %s381, %s382
      %p391 = scmp.eq.s32.totalorder %s35, 0
      %p392 = por %p390, %p391
      %p393 = scmp.ne.s32.totalorder %s381, %s382
      %p394 = scmp.eq.s32.totalorder %s36, 1
      %p395 = por %p393, %p394
      %p397 = scmp.ne.s32.totalorder %s382, %s396
      %p398 = scmp.eq.s32.totalorder %s36, 0
      %p399 = por %p397, %p398
      %s401 = sadd.s32 %s400, 1
      %p404 = scmp.eq.s32.totalorder %s30, 1
      %p405 = scmp.ne.s32.totalorder %s400, %s402
      %p406 = scmp.eq.s32.totalorder %s30, 0
      %p407 = por %p405, %p406
      %p408 = scmp.ne.s32.totalorder %s400, %s402
      %p409 = scmp.eq.s32.totalorder %s35, 1
      %p410 = por %p408, %p409
      %p411 = scmp.ne.s32.totalorder %s402, %s403
      %p412 = scmp.eq.s32.totalorder %s35, 0
      %p413 = por %p411, %p412
      %p414 = scmp.ne.s32.totalorder %s402, %s403
      %p415 = scmp.eq.s32.totalorder %s36, 1
      %p416 = por %p414, %p415
      %p418 = scmp.ne.s32.totalorder %s403, %s417
      %p419 = scmp.eq.s32.totalorder %s36, 0
      %p420 = por %p418, %p419
      %s421 = ssub.s32 %s30, %s37
      %p422 = scmp.eq.s32.totalorder %s421, 0
      %s424 = sadd.s32 %s423, 1
      %s425 = scalar_select %p422, %s423, %s424
      %p428 = pneg %p422
      %p429 = scmp.eq.s32.totalorder %s30, 1
      %p430 = por %p428, %p429
      %p431 = scmp.ne.s32.totalorder %s423, %s426
      %p432 = scmp.eq.s32.totalorder %s30, 0
      %p433 = por %p431, %p432
      %p434 = scmp.ne.s32.totalorder %s423, %s426
      %p435 = scmp.eq.s32.totalorder %s35, 1
      %p436 = por %p434, %p435
      %p437 = scmp.ne.s32.totalorder %s426, %s427
      %p438 = scmp.eq.s32.totalorder %s35, 0
      %p439 = por %p437, %p438
      %p440 = scmp.ne.s32.totalorder %s426, %s427
      %p441 = scmp.eq.s32.totalorder %s36, 1
      %p442 = por %p440, %p441
      %p444 = scmp.ne.s32.totalorder %s427, %s443
      %p445 = scmp.eq.s32.totalorder %s36, 0
      %p446 = por %p444, %p445
      %p447 = scmp.le.s32.totalorder 1, %s30
      %p448 = scmp.lt.s32.totalorder %s30, 3
      %p449 = pnand %p447, %p448
      %p450 = pneg %p449
      // Predicated region
      $region9: #{tpu_custom_call.1} parent=5 // pred_check
        _
      $region10: #{tpu_custom_call.1} parent=5 // pred_check_branch
        %452 = sbr.rel (%p449) target = $region12
      $region11: #{tpu_custom_call.1} parent=5 // pred_region
        %s453 = ssub.s32 %s30, 1
        // Predicated region
        $region13: #{tpu_custom_call.1} parent=11 // pred_check
          %p454 = pneg %p77
        $region14: #{tpu_custom_call.1} parent=11 // pred_check_branch
          %456 = sbr.rel (%p454) target = $region16
        $region15: #{tpu_custom_call.1} parent=11 // pred_region
          %458 = vsyncadd [#allocation3], 0
          %s459 = sshll.u32 %s1, 4
          %s460 = int_to_ptr.hbm [resolvable:$true] %s459
          %s461 = sshll.u32 [#allocation2], 4
          %s462 = int_to_ptr.vmem [resolvable:$true] %s461
          %467 = dma.hbm_to_vmem [thread:$0]  %s460, 512, %s462, [#allocation3], 128, 128, 8
        $region16: #{tpu_custom_call.1} parent=11 // pred_fallthru
          _
        // Predicated region
        $region17: #{tpu_custom_call.1} parent=11 // pred_check
          %p468 = pneg %p98
        $region18: #{tpu_custom_call.1} parent=11 // pred_check_branch
          %470 = sbr.rel (%p468) target = $region20
        $region19: #{tpu_custom_call.1} parent=11 // pred_region
          _
        $region20: #{tpu_custom_call.1} parent=11 // pred_fallthru
          _
        // Predicated region
        $region21: #{tpu_custom_call.1} parent=11 // pred_check
          %p471 = pneg %p119
        $region22: #{tpu_custom_call.1} parent=11 // pred_check_branch
          %473 = sbr.rel (%p471) target = $region24
        $region23: #{tpu_custom_call.1} parent=11 // pred_region
          _
        $region24: #{tpu_custom_call.1} parent=11 // pred_fallthru
          _
        // Predicated region
        $region25: #{tpu_custom_call.1} parent=11 // pred_check
          %p474 = pneg %p140
        $region26: #{tpu_custom_call.1} parent=11 // pred_check_branch
          %476 = sbr.rel (%p474) target = $region28
        $region27: #{tpu_custom_call.1} parent=11 // pred_region
          _
        $region28: #{tpu_custom_call.1} parent=11 // pred_fallthru
          _
        // Predicated region
        $region29: #{tpu_custom_call.1} parent=11 // pred_check
          %p477 = pneg %p161
        $region30: #{tpu_custom_call.1} parent=11 // pred_check_branch
          %479 = sbr.rel (%p477) target = $region32
        $region31: #{tpu_custom_call.1} parent=11 // pred_region
          _
        $region32: #{tpu_custom_call.1} parent=11 // pred_fallthru
          _
        // Predicated region
        $region33: #{tpu_custom_call.1} parent=11 // pred_check
          %p480 = pneg %p182
        $region34: #{tpu_custom_call.1} parent=11 // pred_check_branch
          %482 = sbr.rel (%p480) target = $region36
        $region35: #{tpu_custom_call.1} parent=11 // pred_region
          _
        $region36: #{tpu_custom_call.1} parent=11 // pred_fallthru
          _
        // Predicated region
        $region37: #{tpu_custom_call.1} parent=11 // pred_check
          %p483 = pneg %p203
        $region38: #{tpu_custom_call.1} parent=11 // pred_check_branch
          %485 = sbr.rel (%p483) target = $region40
        $region39: #{tpu_custom_call.1} parent=11 // pred_region
          _
        $region40: #{tpu_custom_call.1} parent=11 // pred_fallthru
          _
        // Predicated region
        $region41: #{tpu_custom_call.1} parent=11 // pred_check
          %p486 = pneg %p224
        $region42: #{tpu_custom_call.1} parent=11 // pred_check_branch
          %488 = sbr.rel (%p486) target = $region44
        $region43: #{tpu_custom_call.1} parent=11 // pred_region
          %490 = vsyncadd [#allocation6], 0
          %s491 = sshll.u32 %s8, 4
          %s492 = int_to_ptr.hbm [resolvable:$true] %s491
          %s493 = sshll.u32 [#allocation5], 4
          %s494 = int_to_ptr.vmem [resolvable:$true] %s493
          %499 = dma.hbm_to_vmem [thread:$0]  %s492, 256, %s494, [#allocation6], 64, 64, 4
        $region44: #{tpu_custom_call.1} parent=11 // pred_fallthru
          _
        // Predicated region
        $region45: #{tpu_custom_call.1} parent=11 // pred_check
          %p500 = pneg %p245
        $region46: #{tpu_custom_call.1} parent=11 // pred_check_branch
          %502 = sbr.rel (%p500) target = $region48
        $region47: #{tpu_custom_call.1} parent=11 // pred_region
          _
        $region48: #{tpu_custom_call.1} parent=11 // pred_fallthru
          _
        // Predicated region
        $region49: #{tpu_custom_call.1} parent=11 // pred_check
          %p503 = pneg %p266
        $region50: #{tpu_custom_call.1} parent=11 // pred_check_branch
          %505 = sbr.rel (%p503) target = $region52
        $region51: #{tpu_custom_call.1} parent=11 // pred_region
          %507 = vsyncadd [#allocation6], 0
          %s508 = sshll.u32 %s10, 4
          %s509 = int_to_ptr.hbm [resolvable:$true] %s508
          %s510 = sshll.u32 [#allocation7], 4
          %s511 = int_to_ptr.vmem [resolvable:$true] %s510
          %516 = dma.hbm_to_vmem [thread:$0]  %s509, 256, %s511, [#allocation6], 64, 64, 4
        $region52: #{tpu_custom_call.1} parent=11 // pred_fallthru
          _
        // Predicated region
        $region53: #{tpu_custom_call.1} parent=11 // pred_check
          %p517 = pneg %p287
        $region54: #{tpu_custom_call.1} parent=11 // pred_check_branch
          %519 = sbr.rel (%p517) target = $region56
        $region55: #{tpu_custom_call.1} parent=11 // pred_region
          _
        $region56: #{tpu_custom_call.1} parent=11 // pred_fallthru
          _
        // Predicated region
        $region57: #{tpu_custom_call.1} parent=11 // pred_check
          %p520 = pneg %p308
        $region58: #{tpu_custom_call.1} parent=11 // pred_check_branch
          %522 = sbr.rel (%p520) target = $region60
        $region59: #{tpu_custom_call.1} parent=11 // pred_region
          %524 = vsyncadd [#allocation9], 0
          %s525 = sshll.u32 %s12, 4
          %s526 = int_to_ptr.hbm [resolvable:$true] %s525
          %s527 = sshll.u32 [#allocation8], 4
          %s528 = int_to_ptr.vmem [resolvable:$true] %s527
          %533 = dma.hbm_to_vmem [thread:$0]  %s526, 256, %s528, [#allocation9], 64, 64, 4
        $region60: #{tpu_custom_call.1} parent=11 // pred_fallthru
          _
        // Predicated region
        $region61: #{tpu_custom_call.1} parent=11 // pred_check
          %p534 = pneg %p329
        $region62: #{tpu_custom_call.1} parent=11 // pred_check_branch
          %536 = sbr.rel (%p534) target = $region64
        $region63: #{tpu_custom_call.1} parent=11 // pred_region
          _
        $region64: #{tpu_custom_call.1} parent=11 // pred_fallthru
          _
        // Predicated region
        $region65: #{tpu_custom_call.1} parent=11 // pred_check
          %p537 = pneg %p350
        $region66: #{tpu_custom_call.1} parent=11 // pred_check_branch
          %539 = sbr.rel (%p537) target = $region68
        $region67: #{tpu_custom_call.1} parent=11 // pred_region
          %541 = vsyncadd [#allocation9], 0
          %s542 = sshll.u32 %s14, 4
          %s543 = int_to_ptr.hbm [resolvable:$true] %s542
          %s544 = sshll.u32 [#allocation10], 4
          %s545 = int_to_ptr.vmem [resolvable:$true] %s544
          %550 = dma.hbm_to_vmem [thread:$0]  %s543, 256, %s545, [#allocation9], 64, 64, 4
        $region68: #{tpu_custom_call.1} parent=11 // pred_fallthru
          _
        // Predicated region
        $region69: #{tpu_custom_call.1} parent=11 // pred_check
          %p551 = pneg %p371
        $region70: #{tpu_custom_call.1} parent=11 // pred_check_branch
          %553 = sbr.rel (%p551) target = $region72
        $region71: #{tpu_custom_call.1} parent=11 // pred_region
          _
        $region72: #{tpu_custom_call.1} parent=11 // pred_fallthru
          _
        // Predicated region
        $region73: #{tpu_custom_call.1} parent=11 // pred_check
          %p554 = pneg %p392
        $region74: #{tpu_custom_call.1} parent=11 // pred_check_branch
          %556 = sbr.rel (%p554) target = $region76
        $region75: #{tpu_custom_call.1} parent=11 // pred_region
          _
        $region76: #{tpu_custom_call.1} parent=11 // pred_fallthru
          _
        // Predicated region
        $region77: #{tpu_custom_call.1} parent=11 // pred_check
          %p557 = pneg %p413
        $region78: #{tpu_custom_call.1} parent=11 // pred_check_branch
          %559 = sbr.rel (%p557) target = $region80
        $region79: #{tpu_custom_call.1} parent=11 // pred_region
          _
        $region80: #{tpu_custom_call.1} parent=11 // pred_fallthru
          _
      $region12: #{tpu_custom_call.1} parent=5 // pred_fallthru
        _
      %p560 = scmp.lt.s32.totalorder %s30, 2
      // Predicated region
      $region81: #{tpu_custom_call.1} parent=5 // pred_check
        %p561 = pneg %p560
      $region82: #{tpu_custom_call.1} parent=5 // pred_check_branch
        %563 = sbr.rel (%p561) target = $region84
      $region83: #{tpu_custom_call.1} parent=5 // pred_region
        // Predicated region
        $region85: #{tpu_custom_call.1} parent=83 // pred_check
          %p564 = pneg %p50
        $region86: #{tpu_custom_call.1} parent=83 // pred_check_branch
          %566 = sbr.rel (%p564) target = $region88
        $region87: #{tpu_custom_call.1} parent=83 // pred_region
          %s567 = smul.u32 2, %s30
          %p568 = scmp.lt.s32.totalorder %s567, 3
          %s569 = scalar_select %p568, %s567, 3
          %s570 = smul.addr %s569, 2
          %s571 = smul.addr %s570, 8
          %s572 = scalar_lea.vmem %s0, %s571
          %s573 = smul.u32 2, %s30
        $region88: #{tpu_custom_call.1} parent=83 // pred_fallthru
          _
      $region84: #{tpu_custom_call.1} parent=5 // pred_fallthru
        _
      %p574 = scmp.le.s32.totalorder 1, %s30
      %p575 = scmp.lt.s32.totalorder %s30, 3
      %p576 = pnand %p574, %p575
      %p577 = pneg %p576
      // Predicated region
      $region89: #{tpu_custom_call.1} parent=5 // pred_check
        _
      $region90: #{tpu_custom_call.1} parent=5 // pred_check_branch
        %579 = sbr.rel (%p576) target = $region92
      $region91: #{tpu_custom_call.1} parent=5 // pred_region
        %s580 = ssub.s32 %s30, 1
        // Predicated region
        $region93: #{tpu_custom_call.1} parent=91 // pred_check
          %p581 = pneg %p77
        $region94: #{tpu_custom_call.1} parent=91 // pred_check_branch
          %583 = sbr.rel (%p581) target = $region96
        $region95: #{tpu_custom_call.1} parent=91 // pred_region
          %585 = dma.done [#allocation3], 512
        $region96: #{tpu_custom_call.1} parent=91 // pred_fallthru
          _
        // Predicated region
        $region97: #{tpu_custom_call.1} parent=91 // pred_check
          %p586 = pneg %p224
        $region98: #{tpu_custom_call.1} parent=91 // pred_check_branch
          %588 = sbr.rel (%p586) target = $region100
        $region99: #{tpu_custom_call.1} parent=91 // pred_region
          %590 = dma.done [#allocation6], 256
        $region100: #{tpu_custom_call.1} parent=91 // pred_fallthru
          _
        // Predicated region
        $region101: #{tpu_custom_call.1} parent=91 // pred_check
          %p591 = pneg %p266
        $region102: #{tpu_custom_call.1} parent=91 // pred_check_branch
          %593 = sbr.rel (%p591) target = $region104
        $region103: #{tpu_custom_call.1} parent=91 // pred_region
          %595 = dma.done [#allocation6], 256
        $region104: #{tpu_custom_call.1} parent=91 // pred_fallthru
          _
        // Predicated region
        $region105: #{tpu_custom_call.1} parent=91 // pred_check
          %p596 = pneg %p308
        $region106: #{tpu_custom_call.1} parent=91 // pred_check_branch
          %598 = sbr.rel (%p596) target = $region108
        $region107: #{tpu_custom_call.1} parent=91 // pred_region
          %600 = dma.done [#allocation9], 256
        $region108: #{tpu_custom_call.1} parent=91 // pred_fallthru
          _
        // Predicated region
        $region109: #{tpu_custom_call.1} parent=91 // pred_check
          %p601 = pneg %p350
        $region110: #{tpu_custom_call.1} parent=91 // pred_check_branch
          %603 = sbr.rel (%p601) target = $region112
        $region111: #{tpu_custom_call.1} parent=91 // pred_region
          %605 = dma.done [#allocation9], 256
        $region112: #{tpu_custom_call.1} parent=91 // pred_fallthru
          _
        %s606 = smul.u32 2, %s35
        %p607 = scmp.lt.s32.totalorder %s606, 3
        %s608 = scalar_select %p607, %s606, 3
        %s609 = smul.addr %s608, 2
        %s610 = smul.addr %s609, 8
        %s611 = scalar_lea.vmem %s0, %s610
        %p612 = pneg %p56
        %p613 = pneg %p53
        %p614 = pneg %p77
        %p615 = pneg %p74
        %p616 = pneg %p98
        %p617 = pneg %p95
        %p618 = pneg %p119
        %p619 = pneg %p116
        %p620 = pneg %p140
        %p621 = pneg %p137
        %p622 = pneg %p161
        %p623 = pneg %p158
        %p624 = pneg %p182
        %p625 = pneg %p179
        %p626 = pneg %p203
        %p627 = pneg %p200
        %p628 = pneg %p224
        %p629 = pneg %p221
        %p630 = pneg %p245
        %p631 = pneg %p242
        %p632 = pneg %p266
        %p633 = pneg %p263
        %p634 = pneg %p287
        %p635 = pneg %p284
        %p636 = pneg %p308
        %p637 = pneg %p305
        %p638 = pneg %p329
        %p639 = pneg %p326
        %p640 = pneg %p350
        %p641 = pneg %p347
        %p642 = pneg %p371
        %p643 = pneg %p368
        %p644 = pneg %p392
        %p645 = pneg %p389
        %p646 = pneg %p413
        %p647 = pneg %p410
        %p648 = pneg %p439
        %p649 = pneg %p436
        %s650 = sand.u32 %s426, 1
        %s651 = scalar_lea.sflag [#allocation4], %s650
        %s652 = sand.u32 %s426, 1
        %s653 = smul.addr %s652, 32
        %s654 = scalar_lea.vmem [#allocation11], %s653
        %s655 = smul.u32 2, %s35
        %p656 = scmp.lt.s32.totalorder %s655, 3
        %s657 = scalar_select %p656, %s655, 3
        %s658 = smul.addr %s657, 2
        %s659 = smul.addr %s658, 8
        %s660 = scalar_lea.vmem %s0, %s659
        %s661 = smul.u32 2, %s35
        %s662 = smul.u32 2, %s35
        %v664 = vld [vmem:[%s660] sm:$0xff]
        %v665 = vld [vmem:[%s660 + $0x8] sm:$0xff]
        %v666 = vld [vmem:[%s660 + $0x10] sm:$0xff]
        %v667 = vld [vmem:[%s660 + $0x18] sm:$0xff]
        %v668 = vld [vmem:[%s2] sm:$0x1]
        %v669 = vld [vmem:[%s3] sm:$0x1]
        %vm670 = vcmask 261120
        %v671 = vsel %vm670, %v664, 0.0
        %672 = vadd.xlane.f32.xlu0 %v671
        %v673 = vpop.xlane.xlu0 %672
        %v674 = vsel %vm670, %v665, 0.0
        %675 = vadd.xlane.f32.xlu0 %v674
        %v676 = vpop.xlane.xlu0 %675
        %v677 = vsel %vm670, %v666, 0.0
        %678 = vadd.xlane.f32.xlu0 %v677
        %v679 = vpop.xlane.xlu0 %678
        %v680 = vsel %vm670, %v667, 0.0
        %681 = vadd.xlane.f32.xlu0 %v680
        %v682 = vpop.xlane.xlu0 %681
        %v683 = vrcp.pop 32.0
        %v684 = vmul.f32 32.0, %v683
        %v685 = vsub.f32 1.0, %v684
        %v686 = vmul.f32 %v683, %v685
        %v687 = vadd.f32 %v683, %v686
        %vm688 = vweird.f32 %v683
        %v689 = vsel %vm688, %v683, %v687
        %v690 = vmul.f32 %v673, %v689
        %v691 = vmul.f32 %v676, %v689
        %v692 = vmul.f32 %v679, %v689
        %v693 = vmul.f32 %v682, %v689
        %v694 = vsub.f32 %v664, %v690
        %v695 = vsub.f32 %v665, %v691
        %v696 = vsub.f32 %v666, %v692
        %v697 = vsub.f32 %v667, %v693
        %v698 = vmul.f32 %v694, %v694
        %v699 = vmul.f32 %v695, %v695
        %v700 = vmul.f32 %v696, %v696
        %v701 = vmul.f32 %v697, %v697
        %v702 = vsel %vm670, %v698, 0.0
        %703 = vadd.xlane.f32.xlu0 %v702
        %v704 = vpop.xlane.xlu0 %703
        %v705 = vsel %vm670, %v699, 0.0
        %706 = vadd.xlane.f32.xlu0 %v705
        %v707 = vpop.xlane.xlu0 %706
        %v708 = vsel %vm670, %v700, 0.0
        %709 = vadd.xlane.f32.xlu0 %v708
        %v710 = vpop.xlane.xlu0 %709
        %v711 = vsel %vm670, %v701, 0.0
        %712 = vadd.xlane.f32.xlu0 %v711
        %v713 = vpop.xlane.xlu0 %712
        %v714 = vmul.f32 %v704, %v689
        %v715 = vmul.f32 %v707, %v689
        %v716 = vmul.f32 %v710, %v689
        %v717 = vmul.f32 %v713, %v689
        %v718 = vadd.f32 %v714, 1e-05
        %v719 = vadd.f32 %v715, 1e-05
        %v720 = vadd.f32 %v716, 1e-05
        %v721 = vadd.f32 %v717, 1e-05
        %v722 = vrsqrt.pop %v718
        %v723 = vmul.f32 %v722, %v718
        %v724 = vmul.f32 %v723, %v722
        %v725 = vmul.f32 0.5, %v724
        %v726 = vsub.f32 1.5, %v725
        %v727 = vmul.f32 %v722, %v726
        %vm728 = vweird.f32 %v718
        %vm729 = vweird.f32 %v722
        %vm730 = vmor %vm728, %vm729
        %v731 = vsel %vm730, %v722, %v727
        %v732 = vrsqrt.pop %v719
        %v733 = vmul.f32 %v732, %v719
        %v734 = vmul.f32 %v733, %v732
        %v735 = vmul.f32 0.5, %v734
        %v736 = vsub.f32 1.5, %v735
        %v737 = vmul.f32 %v732, %v736
        %vm738 = vweird.f32 %v719
        %vm739 = vweird.f32 %v732
        %vm740 = vmor %vm738, %vm739
        %v741 = vsel %vm740, %v732, %v737
        %v742 = vrsqrt.pop %v720
        %v743 = vmul.f32 %v742, %v720
        %v744 = vmul.f32 %v743, %v742
        %v745 = vmul.f32 0.5, %v744
        %v746 = vsub.f32 1.5, %v745
        %v747 = vmul.f32 %v742, %v746
        %vm748 = vweird.f32 %v720
        %vm749 = vweird.f32 %v742
        %vm750 = vmor %vm748, %vm749
        %v751 = vsel %vm750, %v742, %v747
        %v752 = vrsqrt.pop %v721
        %v753 = vmul.f32 %v752, %v721
        %v754 = vmul.f32 %v753, %v752
        %v755 = vmul.f32 0.5, %v754
        %v756 = vsub.f32 1.5, %v755
        %v757 = vmul.f32 %v752, %v756
        %vm758 = vweird.f32 %v721
        %vm759 = vweird.f32 %v752
        %vm760 = vmor %vm758, %vm759
        %v761 = vsel %vm760, %v752, %v757
        %v762 = vmul.f32 %v694, %v731
        %v763 = vmul.f32 %v695, %v741
        %v764 = vmul.f32 %v696, %v751
        %v765 = vmul.f32 %v697, %v761
        %v767 = vperm.slane %v668, 0
        %v769 = vmul.f32 %v762, %v767
        %v770 = vmul.f32 %v763, %v767
        %v771 = vmul.f32 %v764, %v767
        %v772 = vmul.f32 %v765, %v767
        %v774 = vperm.slane %v669, 0
        %v776 = vadd.f32 %v769, %v774
        %v777 = vadd.f32 %v770, %v774
        %v778 = vadd.f32 %v771, %v774
        %v779 = vadd.f32 %v772, %v774
        %v780 = vpack.c.bf16 %v777, %v776
        %v781 = vpack.c.bf16 %v779, %v778
        %v782 = vld [vmem:[%s6] sm:$0xf]
        %v783 = vld [vmem:[%s6 + $0x4] sm:$0xf]
        %v784 = vld [vmem:[%s6 + $0x8] sm:$0xf]
        %v785 = vld [vmem:[%s6 + $0xc] sm:$0xf]
        %v786 = vld [vmem:[%s7] sm:$0x1]
        %v788 = vperm.slane %v786, 0
        %v794 = vunpack.c.l.b16 %v782
        %v795 = vunpack.c.l.b16 %v783
        %v796 = vunpack.c.l.b16 %v784
        %v797 = vunpack.c.l.b16 %v785
        %v798 = vpack.c.b16 %v795, %v794
        %v799 = vpack.c.b16 %v797, %v796
        %v803 = vsel %vm670, %v780, 0
        %v806 = vsel %vm670, %v781, 0
        %808 = vmatpush.bf16.msra.mxu0 0
        %809 = vmatpush.bf16.msra.mxu0 0
        %810 = vmatpush.bf16.msra.mxu0 0
        %811 = vmatpush.bf16.msra.mxu0 0
        %812 = vmatpush.bf16.msra.mxu0 0
        %813 = vmatpush.bf16.msra.mxu0 0
        %814 = vmatpush.bf16.msra.mxu0 %v799
        %815 = vmatpush.bf16.msra.mxu0 %v798
        %816 = vmatmul.bf16.gmra.mxu0 %v803
        %v817 = vpop.f32.mrf.mxu0
        %v818 = vadd.f32 %v788, %v817
        %v819 = vpop.f32.mrf.mxu0
        %v820 = vadd.f32 %v788, %v819
        %821 = vmatmul.bf16.gmra.mxu0 %v806
        %v822 = vpop.f32.mrf.mxu0
        %v823 = vadd.f32 %v788, %v822
        %v824 = vpop.f32.mrf.mxu0
        %v825 = vadd.f32 %v788, %v824
        %826 = vdwg.mxu0
        %v827 = vld [vmem:[#allocation5] sm:$0xf]
        %v828 = vld [vmem:[#allocation5 + $0x4] sm:$0xf]
        %v829 = vld [vmem:[#allocation5 + $0x8] sm:$0xf]
        %v830 = vld [vmem:[#allocation5 + $0xc] sm:$0xf]
        %v831 = vld [vmem:[%s9] sm:$0x1]
        %v833 = vperm.slane %v831, 0
        %v839 = vunpack.c.l.b16 %v827
        %v840 = vunpack.c.l.b16 %v828
        %v841 = vunpack.c.l.b16 %v829
        %v842 = vunpack.c.l.b16 %v830
        %v843 = vpack.c.b16 %v840, %v839
        %v844 = vpack.c.b16 %v842, %v841
        %847 = vmatpush.bf16.msra.mxu0 0
        %848 = vmatpush.bf16.msra.mxu0 0
        %849 = vmatpush.bf16.msra.mxu0 0
        %850 = vmatpush.bf16.msra.mxu0 0
        %851 = vmatpush.bf16.msra.mxu0 0
        %852 = vmatpush.bf16.msra.mxu0 0
        %853 = vmatpush.bf16.msra.mxu0 %v844
        %854 = vmatpush.bf16.msra.mxu0 %v843
        %855 = vmatmul.bf16.gmra.mxu0 %v803
        %v856 = vpop.f32.mrf.mxu0
        %v857 = vadd.f32 %v833, %v856
        %v858 = vpop.f32.mrf.mxu0
        %v859 = vadd.f32 %v833, %v858
        %860 = vmatmul.bf16.gmra.mxu0 %v806
        %v861 = vpop.f32.mrf.mxu0
        %v862 = vadd.f32 %v833, %v861
        %v863 = vpop.f32.mrf.mxu0
        %v864 = vadd.f32 %v833, %v863
        %865 = vdwg.mxu0
        %v866 = vld [vmem:[#allocation7] sm:$0xf]
        %v867 = vld [vmem:[#allocation7 + $0x4] sm:$0xf]
        %v868 = vld [vmem:[#allocation7 + $0x8] sm:$0xf]
        %v869 = vld [vmem:[#allocation7 + $0xc] sm:$0xf]
        %v870 = vld [vmem:[%s11] sm:$0x1]
        %v872 = vperm.slane %v870, 0
        %v878 = vunpack.c.l.b16 %v866
        %v879 = vunpack.c.l.b16 %v867
        %v880 = vunpack.c.l.b16 %v868
        %v881 = vunpack.c.l.b16 %v869
        %v882 = vpack.c.b16 %v879, %v878
        %v883 = vpack.c.b16 %v881, %v880
        %886 = vmatpush.bf16.msra.mxu0 0
        %887 = vmatpush.bf16.msra.mxu0 0
        %888 = vmatpush.bf16.msra.mxu0 0
        %889 = vmatpush.bf16.msra.mxu0 0
        %890 = vmatpush.bf16.msra.mxu0 0
        %891 = vmatpush.bf16.msra.mxu0 0
        %892 = vmatpush.bf16.msra.mxu0 %v883
        %893 = vmatpush.bf16.msra.mxu0 %v882
        %894 = vmatmul.bf16.gmra.mxu0 %v803
        %v895 = vpop.f32.mrf.mxu0
        %v896 = vadd.f32 %v872, %v895
        %v897 = vpop.f32.mrf.mxu0
        %v898 = vadd.f32 %v872, %v897
        %899 = vmatmul.bf16.gmra.mxu0 %v806
        %v900 = vpop.f32.mrf.mxu0
        %v901 = vadd.f32 %v872, %v900
        %v902 = vpop.f32.mrf.mxu0
        %v903 = vadd.f32 %v872, %v902
        %904 = vdwg.mxu0
        %vm905 = vcmp.gt.f32.partialorder %v818, 0.0
        %vm906 = vcmp.gt.f32.partialorder %v820, 0.0
        %vm907 = vcmp.gt.f32.partialorder %v823, 0.0
        %vm908 = vcmp.gt.f32.partialorder %v825, 0.0
        %v909 = vadd.f32 %v818, 1.0
        %v910 = vadd.f32 %v820, 1.0
        %v911 = vadd.f32 %v823, 1.0
        %v912 = vadd.f32 %v825, 1.0
        %v913 = vmin.f32 %v818, 0.0
        %v914 = vmin.f32 %v820, 0.0
        %v915 = vmin.f32 %v823, 0.0
        %v916 = vmin.f32 %v825, 0.0
        %v917 = vmul.f32 %v913, 1.442695
        %v918 = vpow.pop %v917
        %v919 = vmul.f32 %v914, 1.442695
        %v920 = vpow.pop %v919
        %v921 = vmul.f32 %v915, 1.442695
        %v922 = vpow.pop %v921
        %v923 = vmul.f32 %v916, 1.442695
        %v924 = vpow.pop %v923
        %v925 = vsel %vm905, %v909, %v918
        %v926 = vsel %vm906, %v910, %v920
        %v927 = vsel %vm907, %v911, %v922
        %v928 = vsel %vm908, %v912, %v924
        %vm929 = vcmp.gt.f32.partialorder %v857, 0.0
        %vm930 = vcmp.gt.f32.partialorder %v859, 0.0
        %vm931 = vcmp.gt.f32.partialorder %v862, 0.0
        %vm932 = vcmp.gt.f32.partialorder %v864, 0.0
        %v933 = vadd.f32 %v857, 1.0
        %v934 = vadd.f32 %v859, 1.0
        %v935 = vadd.f32 %v862, 1.0
        %v936 = vadd.f32 %v864, 1.0
        %v937 = vmin.f32 %v857, 0.0
        %v938 = vmin.f32 %v859, 0.0
        %v939 = vmin.f32 %v862, 0.0
        %v940 = vmin.f32 %v864, 0.0
        %v941 = vmul.f32 %v937, 1.442695
        %v942 = vpow.pop %v941
        %v943 = vmul.f32 %v938, 1.442695
        %v944 = vpow.pop %v943
        %v945 = vmul.f32 %v939, 1.442695
        %v946 = vpow.pop %v945
        %v947 = vmul.f32 %v940, 1.442695
        %v948 = vpow.pop %v947
        %v949 = vsel %vm929, %v933, %v942
        %v950 = vsel %vm930, %v934, %v944
        %v951 = vsel %vm931, %v935, %v946
        %v952 = vsel %vm932, %v936, %v948
        %v953 = vld [vmem:[#allocation2] sm:$0xff]
        %v954 = vld [vmem:[#allocation2 + $0x8] sm:$0xff]
        %v955 = vld [vmem:[#allocation2 + $0x10] sm:$0xff]
        %v956 = vld [vmem:[#allocation2 + $0x18] sm:$0xff]
        %v957 = vpack.c.bf16 %v954, %v953
        %v958 = vpack.c.bf16 %v956, %v955
        %v959 = vpack.c.bf16 %v950, %v949
        %v960 = vpack.c.bf16 %v898, %v896
        %961 = vxpose.xlu0.c.b16.start [1/8] %v959, 128
        %962 = vxpose.xlu0.c.b16.cont [2/8] 0, 128
        %963 = vxpose.xlu0.c.b16.cont [3/8] 0, 128
        %964 = vxpose.xlu0.c.b16.cont [4/8] 0, 128
        %965 = vxpose.xlu0.c.b16.cont [5/8] 0, 128
        %966 = vxpose.xlu0.c.b16.cont [6/8] 0, 128
        %967 = vxpose.xlu0.c.b16.cont [7/8] 0, 128
        %968 = vxpose.xlu0.c.b16.end [8/8] 0, 128
        %v969 = vpop.trf.xlu0
        %v970 = vpop.trf.xlu0
        %v971 = vpop.trf.xlu0
        %v972 = vpop.trf.xlu0
        %v973 = vpop.trf.xlu0
        %v974 = vpop.trf.xlu0
        %v975 = vpop.trf.xlu0
        %v976 = vpop.trf.xlu0
        %vm977 = vcmask 130048
        %v979 = vsel %vm977, %v969, 0
        %v982 = vsel %vm977, %v970, 0
        %984 = vmatpush.bf16.msra.mxu0 0
        %985 = vmatpush.bf16.msra.mxu0 0
        %986 = vmatpush.bf16.msra.mxu0 0
        %987 = vmatpush.bf16.msra.mxu0 0
        %988 = vmatpush.bf16.msra.mxu0 0
        %989 = vmatpush.bf16.msra.mxu0 0
        %990 = vmatpush.bf16.msra.mxu0 0
        %991 = vmatpush.bf16.msra.mxu0 %v960
        %992 = vmatmul.bf16.gmra.mxu0 %v979
        %v993 = vpop.f32.mrf.mxu0
        %v994 = vadd.f32 0.0, %v993
        %v995 = vpop.f32.mrf.mxu0
        %v996 = vadd.f32 0.0, %v995
        %997 = vmatmul.bf16.gmra.mxu0 %v982
        %v998 = vpop.f32.mrf.mxu0
        %v999 = vadd.f32 0.0, %v998
        %v1000 = vpop.f32.mrf.mxu0
        %v1001 = vadd.f32 0.0, %v1000
        %1002 = vdwg.mxu0
        %v1003 = vsel %vm670, %v949, 0.0
        %v1004 = vsel %vm670, %v950, 0.0
        %v1005 = vadd.f32 %v1003, %v1004
        %v1006 = vrot.slane %v1005, 4
        %v1007 = vadd.f32 %v1005, %v1006
        %v1008 = vrot.slane %v1007, 2
        %v1009 = vadd.f32 %v1007, %v1008
        %v1010 = vrot.slane %v1009, 1
        %v1011 = vadd.f32 %v1009, %v1010
        %v1012 = vpack.c.bf16 %v926, %v925
        %v1013 = vmul.f32 %v953, %v994
        %v1014 = vmul.f32 %v954, %v996
        %v1015 = vmul.f32 %v955, %v999
        %v1016 = vmul.f32 %v956, %v1001
        %v1017 = vpack.c.bf16 %v1014, %v1013
        %v1018 = vpack.c.bf16 %v1016, %v1015
        %v1020 = vsel %vm670, %v1012, 0
        %1022 = vmatpush.bf16.msra.mxu0 0
        %1023 = vmatpush.bf16.msra.mxu0 0
        %1024 = vmatpush.bf16.msra.mxu0 0
        %1025 = vmatpush.bf16.msra.mxu0 0
        %1026 = vmatpush.bf16.msra.mxu0 0
        %1027 = vmatpush.bf16.msra.mxu0 0
        %1028 = vmatpush.bf16.msra.mxu0 %v1018
        %1029 = vmatpush.bf16.msra.mxu0 %v1017
        %1030 = vmatmul.bf16.gmra.mxu0 %v1020
        %v1031 = vpop.f32.mrf.mxu0
        %v1032 = vadd.f32 0.0, %v1031
        %v1033 = vpop.f32.mrf.mxu0
        %v1034 = vadd.f32 0.0, %v1033
        %1035 = vdwg.mxu0
        %v1036 = vmul.f32 %v925, %v1011
        %v1037 = vmul.f32 %v926, %v1011
        %v1038 = vpack.c.bf16 %v1037, %v1036
        %v1040 = vsel %vm670, %v1038, 0
        %1042 = vmatpush.bf16.msra.mxu0 0
        %1043 = vmatpush.bf16.msra.mxu0 0
        %1044 = vmatpush.bf16.msra.mxu0 0
        %1045 = vmatpush.bf16.msra.mxu0 0
        %1046 = vmatpush.bf16.msra.mxu0 0
        %1047 = vmatpush.bf16.msra.mxu0 0
        %1048 = vmatpush.bf16.msra.mxu0 %v958
        %1049 = vmatpush.bf16.msra.mxu0 %v957
        %1050 = vmatmul.bf16.gmra.mxu0 %v1040
        %v1051 = vpop.f32.mrf.mxu0
        %v1052 = vadd.f32 1e-06, %v1051
        %v1053 = vpop.f32.mrf.mxu0
        %v1054 = vadd.f32 1e-06, %v1053
        %1055 = vdwg.mxu0
        %v1056 = vrcp.pop %v1052
        %v1057 = vrcp.pop %v1054
        %v1058 = vmul.f32 %v1032, %v1056
        %v1059 = vmul.f32 %v1034, %v1057
        %v1060 = vpack.c.bf16 %v952, %v951
        %v1061 = vpack.c.bf16 %v903, %v901
        %1062 = vxpose.xlu0.c.b16.start [1/8] %v1060, 128
        %1063 = vxpose.xlu0.c.b16.cont [2/8] 0, 128
        %1064 = vxpose.xlu0.c.b16.cont [3/8] 0, 128
        %1065 = vxpose.xlu0.c.b16.cont [4/8] 0, 128
        %1066 = vxpose.xlu0.c.b16.cont [5/8] 0, 128
        %1067 = vxpose.xlu0.c.b16.cont [6/8] 0, 128
        %1068 = vxpose.xlu0.c.b16.cont [7/8] 0, 128
        %1069 = vxpose.xlu0.c.b16.end [8/8] 0, 128
        %v1070 = vpop.trf.xlu0
        %v1071 = vpop.trf.xlu0
        %v1072 = vpop.trf.xlu0
        %v1073 = vpop.trf.xlu0
        %v1074 = vpop.trf.xlu0
        %v1075 = vpop.trf.xlu0
        %v1076 = vpop.trf.xlu0
        %v1077 = vpop.trf.xlu0
        %v1079 = vsel %vm977, %v1070, 0
        %v1082 = vsel %vm977, %v1071, 0
        %1084 = vmatpush.bf16.msra.mxu0 0
        %1085 = vmatpush.bf16.msra.mxu0 0
        %1086 = vmatpush.bf16.msra.mxu0 0
        %1087 = vmatpush.bf16.msra.mxu0 0
        %1088 = vmatpush.bf16.msra.mxu0 0
        %1089 = vmatpush.bf16.msra.mxu0 0
        %1090 = vmatpush.bf16.msra.mxu0 0
        %1091 = vmatpush.bf16.msra.mxu0 %v1061
        %1092 = vmatmul.bf16.gmra.mxu0 %v1079
        %v1093 = vpop.f32.mrf.mxu0
        %v1094 = vadd.f32 0.0, %v1093
        %v1095 = vpop.f32.mrf.mxu0
        %v1096 = vadd.f32 0.0, %v1095
        %1097 = vmatmul.bf16.gmra.mxu0 %v1082
        %v1098 = vpop.f32.mrf.mxu0
        %v1099 = vadd.f32 0.0, %v1098
        %v1100 = vpop.f32.mrf.mxu0
        %v1101 = vadd.f32 0.0, %v1100
        %1102 = vdwg.mxu0
        %v1103 = vsel %vm670, %v951, 0.0
        %v1104 = vsel %vm670, %v952, 0.0
        %v1105 = vadd.f32 %v1103, %v1104
        %v1106 = vrot.slane %v1105, 4
        %v1107 = vadd.f32 %v1105, %v1106
        %v1108 = vrot.slane %v1107, 2
        %v1109 = vadd.f32 %v1107, %v1108
        %v1110 = vrot.slane %v1109, 1
        %v1111 = vadd.f32 %v1109, %v1110
        %v1112 = vpack.c.bf16 %v928, %v927
        %v1113 = vmul.f32 %v953, %v1094
        %v1114 = vmul.f32 %v954, %v1096
        %v1115 = vmul.f32 %v955, %v1099
        %v1116 = vmul.f32 %v956, %v1101
        %v1117 = vpack.c.bf16 %v1114, %v1113
        %v1118 = vpack.c.bf16 %v1116, %v1115
        %v1120 = vsel %vm670, %v1112, 0
        %1122 = vmatpush.bf16.msra.mxu0 0
        %1123 = vmatpush.bf16.msra.mxu0 0
        %1124 = vmatpush.bf16.msra.mxu0 0
        %1125 = vmatpush.bf16.msra.mxu0 0
        %1126 = vmatpush.bf16.msra.mxu0 0
        %1127 = vmatpush.bf16.msra.mxu0 0
        %1128 = vmatpush.bf16.msra.mxu0 %v1118
        %1129 = vmatpush.bf16.msra.mxu0 %v1117
        %1130 = vmatmul.bf16.gmra.mxu0 %v1120
        %v1131 = vpop.f32.mrf.mxu0
        %v1132 = vadd.f32 0.0, %v1131
        %v1133 = vpop.f32.mrf.mxu0
        %v1134 = vadd.f32 0.0, %v1133
        %1135 = vdwg.mxu0
        %v1136 = vmul.f32 %v927, %v1111
        %v1137 = vmul.f32 %v928, %v1111
        %v1138 = vpack.c.bf16 %v1137, %v1136
        %v1140 = vsel %vm670, %v1138, 0
        %1142 = vmatpush.bf16.msra.mxu0 0
        %1143 = vmatpush.bf16.msra.mxu0 0
        %1144 = vmatpush.bf16.msra.mxu0 0
        %1145 = vmatpush.bf16.msra.mxu0 0
        %1146 = vmatpush.bf16.msra.mxu0 0
        %1147 = vmatpush.bf16.msra.mxu0 0
        %1148 = vmatpush.bf16.msra.mxu0 %v958
        %1149 = vmatpush.bf16.msra.mxu0 %v957
        %1150 = vmatmul.bf16.gmra.mxu0 %v1140
        %v1151 = vpop.f32.mrf.mxu0
        %v1152 = vadd.f32 1e-06, %v1151
        %v1153 = vpop.f32.mrf.mxu0
        %v1154 = vadd.f32 1e-06, %v1153
        %1155 = vdwg.mxu0
        %v1156 = vrcp.pop %v1152
        %v1157 = vrcp.pop %v1154
        %v1158 = vmul.f32 %v1132, %v1156
        %v1159 = vmul.f32 %v1134, %v1157
        %v1160 = vpack.c.bf16 %v1059, %v1058
        %v1161 = vpack.c.bf16 %v1159, %v1158
        %v1162 = vld [vmem:[#allocation8] sm:$0xf]
        %v1163 = vld [vmem:[#allocation8 + $0x4] sm:$0xf]
        %v1164 = vld [vmem:[#allocation8 + $0x8] sm:$0xf]
        %v1165 = vld [vmem:[#allocation8 + $0xc] sm:$0xf]
        %v1166 = vld [vmem:[%s13] sm:$0x1]
        %v1168 = vperm.slane %v1166, 0
        %v1174 = vunpack.c.l.b16 %v1162
        %v1175 = vunpack.c.l.b16 %v1163
        %v1176 = vunpack.c.l.b16 %v1164
        %v1177 = vunpack.c.l.b16 %v1165
        %v1178 = vpack.c.b16 %v1175, %v1174
        %v1179 = vpack.c.b16 %v1177, %v1176
        %v1183 = vsel %vm670, %v1160, 0
        %v1186 = vsel %vm670, %v1161, 0
        %1188 = vmatpush.bf16.msra.mxu0 0
        %1189 = vmatpush.bf16.msra.mxu0 0
        %1190 = vmatpush.bf16.msra.mxu0 0
        %1191 = vmatpush.bf16.msra.mxu0 0
        %1192 = vmatpush.bf16.msra.mxu0 0
        %1193 = vmatpush.bf16.msra.mxu0 0
        %1194 = vmatpush.bf16.msra.mxu0 %v1179
        %1195 = vmatpush.bf16.msra.mxu0 %v1178
        %1196 = vmatmul.bf16.gmra.mxu0 %v1183
        %v1197 = vpop.f32.mrf.mxu0
        %v1198 = vadd.f32 %v1168, %v1197
        %v1199 = vpop.f32.mrf.mxu0
        %v1200 = vadd.f32 %v1168, %v1199
        %1201 = vmatmul.bf16.gmra.mxu0 %v1186
        %v1202 = vpop.f32.mrf.mxu0
        %v1203 = vadd.f32 %v1168, %v1202
        %v1204 = vpop.f32.mrf.mxu0
        %v1205 = vadd.f32 %v1168, %v1204
        %1206 = vdwg.mxu0
        %v1207 = vadd.f32 %v664, %v1198
        %v1208 = vadd.f32 %v665, %v1200
        %v1209 = vadd.f32 %v666, %v1203
        %v1210 = vadd.f32 %v667, %v1205
        %v1211 = vld [vmem:[%s4] sm:$0x1]
        %v1212 = vld [vmem:[%s5] sm:$0x1]
        %v1213 = vsel %vm670, %v1207, 0.0
        %1214 = vadd.xlane.f32.xlu0 %v1213
        %v1215 = vpop.xlane.xlu0 %1214
        %v1216 = vsel %vm670, %v1208, 0.0
        %1217 = vadd.xlane.f32.xlu0 %v1216
        %v1218 = vpop.xlane.xlu0 %1217
        %v1219 = vsel %vm670, %v1209, 0.0
        %1220 = vadd.xlane.f32.xlu0 %v1219
        %v1221 = vpop.xlane.xlu0 %1220
        %v1222 = vsel %vm670, %v1210, 0.0
        %1223 = vadd.xlane.f32.xlu0 %v1222
        %v1224 = vpop.xlane.xlu0 %1223
        %v1225 = vmul.f32 %v1215, %v689
        %v1226 = vmul.f32 %v1218, %v689
        %v1227 = vmul.f32 %v1221, %v689
        %v1228 = vmul.f32 %v1224, %v689
        %v1229 = vsub.f32 %v1207, %v1225
        %v1230 = vsub.f32 %v1208, %v1226
        %v1231 = vsub.f32 %v1209, %v1227
        %v1232 = vsub.f32 %v1210, %v1228
        %v1233 = vmul.f32 %v1229, %v1229
        %v1234 = vmul.f32 %v1230, %v1230
        %v1235 = vmul.f32 %v1231, %v1231
        %v1236 = vmul.f32 %v1232, %v1232
        %v1237 = vsel %vm670, %v1233, 0.0
        %1238 = vadd.xlane.f32.xlu0 %v1237
        %v1239 = vpop.xlane.xlu0 %1238
        %v1240 = vsel %vm670, %v1234, 0.0
        %1241 = vadd.xlane.f32.xlu0 %v1240
        %v1242 = vpop.xlane.xlu0 %1241
        %v1243 = vsel %vm670, %v1235, 0.0
        %1244 = vadd.xlane.f32.xlu0 %v1243
        %v1245 = vpop.xlane.xlu0 %1244
        %v1246 = vsel %vm670, %v1236, 0.0
        %1247 = vadd.xlane.f32.xlu0 %v1246
        %v1248 = vpop.xlane.xlu0 %1247
        %v1249 = vmul.f32 %v1239, %v689
        %v1250 = vmul.f32 %v1242, %v689
        %v1251 = vmul.f32 %v1245, %v689
        %v1252 = vmul.f32 %v1248, %v689
        %v1253 = vadd.f32 %v1249, 1e-05
        %v1254 = vadd.f32 %v1250, 1e-05
        %v1255 = vadd.f32 %v1251, 1e-05
        %v1256 = vadd.f32 %v1252, 1e-05
        %v1257 = vrsqrt.pop %v1253
        %v1258 = vmul.f32 %v1257, %v1253
        %v1259 = vmul.f32 %v1258, %v1257
        %v1260 = vmul.f32 0.5, %v1259
        %v1261 = vsub.f32 1.5, %v1260
        %v1262 = vmul.f32 %v1257, %v1261
        %vm1263 = vweird.f32 %v1253
        %vm1264 = vweird.f32 %v1257
        %vm1265 = vmor %vm1263, %vm1264
        %v1266 = vsel %vm1265, %v1257, %v1262
        %v1267 = vrsqrt.pop %v1254
        %v1268 = vmul.f32 %v1267, %v1254
        %v1269 = vmul.f32 %v1268, %v1267
        %v1270 = vmul.f32 0.5, %v1269
        %v1271 = vsub.f32 1.5, %v1270
        %v1272 = vmul.f32 %v1267, %v1271
        %vm1273 = vweird.f32 %v1254
        %vm1274 = vweird.f32 %v1267
        %vm1275 = vmor %vm1273, %vm1274
        %v1276 = vsel %vm1275, %v1267, %v1272
        %v1277 = vrsqrt.pop %v1255
        %v1278 = vmul.f32 %v1277, %v1255
        %v1279 = vmul.f32 %v1278, %v1277
        %v1280 = vmul.f32 0.5, %v1279
        %v1281 = vsub.f32 1.5, %v1280
        %v1282 = vmul.f32 %v1277, %v1281
        %vm1283 = vweird.f32 %v1255
        %vm1284 = vweird.f32 %v1277
        %vm1285 = vmor %vm1283, %vm1284
        %v1286 = vsel %vm1285, %v1277, %v1282
        %v1287 = vrsqrt.pop %v1256
        %v1288 = vmul.f32 %v1287, %v1256
        %v1289 = vmul.f32 %v1288, %v1287
        %v1290 = vmul.f32 0.5, %v1289
        %v1291 = vsub.f32 1.5, %v1290
        %v1292 = vmul.f32 %v1287, %v1291
        %vm1293 = vweird.f32 %v1256
        %vm1294 = vweird.f32 %v1287
        %vm1295 = vmor %vm1293, %vm1294
        %v1296 = vsel %vm1295, %v1287, %v1292
        %v1297 = vmul.f32 %v1229, %v1266
        %v1298 = vmul.f32 %v1230, %v1276
        %v1299 = vmul.f32 %v1231, %v1286
        %v1300 = vmul.f32 %v1232, %v1296
        %v1302 = vperm.slane %v1211, 0
        %v1304 = vmul.f32 %v1297, %v1302
        %v1305 = vmul.f32 %v1298, %v1302
        %v1306 = vmul.f32 %v1299, %v1302
        %v1307 = vmul.f32 %v1300, %v1302
        %v1309 = vperm.slane %v1212, 0
        %v1311 = vadd.f32 %v1304, %v1309
        %v1312 = vadd.f32 %v1305, %v1309
        %v1313 = vadd.f32 %v1306, %v1309
        %v1314 = vadd.f32 %v1307, %v1309
        %v1315 = vpack.c.bf16 %v1312, %v1311
        %v1316 = vpack.c.bf16 %v1314, %v1313
        %v1317 = vld [vmem:[#allocation10] sm:$0xf]
        %v1318 = vld [vmem:[#allocation10 + $0x4] sm:$0xf]
        %v1319 = vld [vmem:[#allocation10 + $0x8] sm:$0xf]
        %v1320 = vld [vmem:[#allocation10 + $0xc] sm:$0xf]
        %v1321 = vld [vmem:[%s15] sm:$0x1]
        %v1323 = vperm.slane %v1321, 0
        %v1329 = vunpack.c.l.b16 %v1317
        %v1330 = vunpack.c.l.b16 %v1318
        %v1331 = vunpack.c.l.b16 %v1319
        %v1332 = vunpack.c.l.b16 %v1320
        %v1333 = vpack.c.b16 %v1330, %v1329
        %v1334 = vpack.c.b16 %v1332, %v1331
        %v1338 = vsel %vm670, %v1315, 0
        %v1341 = vsel %vm670, %v1316, 0
        %1343 = vmatpush.bf16.msra.mxu0 0
        %1344 = vmatpush.bf16.msra.mxu0 0
        %1345 = vmatpush.bf16.msra.mxu0 0
        %1346 = vmatpush.bf16.msra.mxu0 0
        %1347 = vmatpush.bf16.msra.mxu0 0
        %1348 = vmatpush.bf16.msra.mxu0 0
        %1349 = vmatpush.bf16.msra.mxu0 %v1334
        %1350 = vmatpush.bf16.msra.mxu0 %v1333
        %1351 = vmatmul.bf16.gmra.mxu0 %v1338
        %v1352 = vpop.f32.mrf.mxu0
        %v1353 = vadd.f32 %v1323, %v1352
        %v1354 = vpop.f32.mrf.mxu0
        %v1355 = vadd.f32 %v1323, %v1354
        %1356 = vmatmul.bf16.gmra.mxu0 %v1341
        %v1357 = vpop.f32.mrf.mxu0
        %v1358 = vadd.f32 %v1323, %v1357
        %v1359 = vpop.f32.mrf.mxu0
        %v1360 = vadd.f32 %v1323, %v1359
        %1361 = vdwg.mxu0
        %v1362 = vmax.f32 %v1353, 0.0
        %v1363 = vmax.f32 %v1355, 0.0
        %v1364 = vmax.f32 %v1358, 0.0
        %v1365 = vmax.f32 %v1360, 0.0
        %v1366 = vpack.c.bf16 %v1363, %v1362
        %v1367 = vpack.c.bf16 %v1365, %v1364
        %v1368 = vld [vmem:[%s16] sm:$0xf]
        %v1369 = vld [vmem:[%s16 + $0x4] sm:$0xf]
        %v1370 = vld [vmem:[%s16 + $0x8] sm:$0xf]
        %v1371 = vld [vmem:[%s16 + $0xc] sm:$0xf]
        %v1372 = vld [vmem:[%s16 + $0x10] sm:$0xf]
        %v1373 = vld [vmem:[%s16 + $0x14] sm:$0xf]
        %v1374 = vld [vmem:[%s16 + $0x18] sm:$0xf]
        %v1375 = vld [vmem:[%s16 + $0x1c] sm:$0xf]
        %v1376 = vld [vmem:[%s16 + $0x20] sm:$0xf]
        %v1377 = vld [vmem:[%s16 + $0x24] sm:$0xf]
        %v1378 = vld [vmem:[%s16 + $0x28] sm:$0xf]
        %v1379 = vld [vmem:[%s16 + $0x2c] sm:$0xf]
        %v1380 = vld [vmem:[%s16 + $0x30] sm:$0xf]
        %v1381 = vld [vmem:[%s16 + $0x34] sm:$0xf]
        %v1382 = vld [vmem:[%s16 + $0x38] sm:$0xf]
        %v1383 = vld [vmem:[%s16 + $0x3c] sm:$0xf]
        %v1384 = vld [vmem:[%s17] sm:$0x1]
        %v1386 = vperm.slane %v1384, 0
        %v1404 = vunpack.c.l.b16 %v1368
        %v1405 = vunpack.c.l.b16 %v1369
        %v1406 = vunpack.c.l.b16 %v1370
        %v1407 = vunpack.c.l.b16 %v1371
        %v1408 = vunpack.c.l.b16 %v1372
        %v1409 = vunpack.c.l.b16 %v1373
        %v1410 = vunpack.c.l.b16 %v1374
        %v1411 = vunpack.c.l.b16 %v1375
        %v1412 = vunpack.c.l.b16 %v1376
        %v1413 = vunpack.c.l.b16 %v1377
        %v1414 = vunpack.c.l.b16 %v1378
        %v1415 = vunpack.c.l.b16 %v1379
        %v1416 = vunpack.c.l.b16 %v1380
        %v1417 = vunpack.c.l.b16 %v1381
        %v1418 = vunpack.c.l.b16 %v1382
        %v1419 = vunpack.c.l.b16 %v1383
        %v1420 = vpack.c.b16 %v1405, %v1404
        %v1421 = vpack.c.b16 %v1407, %v1406
        %v1422 = vpack.c.b16 %v1409, %v1408
        %v1423 = vpack.c.b16 %v1411, %v1410
        %v1424 = vpack.c.b16 %v1413, %v1412
        %v1425 = vpack.c.b16 %v1415, %v1414
        %v1426 = vpack.c.b16 %v1417, %v1416
        %v1427 = vpack.c.b16 %v1419, %v1418
        %1436 = vmatpush.bf16.msra.mxu0 %v1427
        %1437 = vmatpush.bf16.msra.mxu0 %v1426
        %1438 = vmatpush.bf16.msra.mxu0 %v1425
        %1439 = vmatpush.bf16.msra.mxu0 %v1424
        %1440 = vmatpush.bf16.msra.mxu0 %v1423
        %1441 = vmatpush.bf16.msra.mxu0 %v1422
        %1442 = vmatpush.bf16.msra.mxu0 %v1421
        %1443 = vmatpush.bf16.msra.mxu0 %v1420
        %1444 = vmatmul.bf16.gmra.mxu0 %v1366
        %v1445 = vpop.f32.mrf.mxu0
        %v1446 = vadd.f32 %v1386, %v1445
        %v1447 = vpop.f32.mrf.mxu0
        %v1448 = vadd.f32 %v1386, %v1447
        %1449 = vmatmul.bf16.gmra.mxu0 %v1367
        %v1450 = vpop.f32.mrf.mxu0
        %v1451 = vadd.f32 %v1386, %v1450
        %v1452 = vpop.f32.mrf.mxu0
        %v1453 = vadd.f32 %v1386, %v1452
        %1454 = vdwg.mxu0
        %v1455 = vadd.f32 %v1207, %v1446
        %v1456 = vadd.f32 %v1208, %v1448
        %v1457 = vadd.f32 %v1209, %v1451
        %v1458 = vadd.f32 %v1210, %v1453
        %1459 = vst.msk [vmem:[%s654] sm:$0xff] %vm670, %v1455
        %1460 = vst.msk [vmem:[%s654 + $0x8] sm:$0xff] %vm670, %v1456
        %1461 = vst.msk [vmem:[%s654 + $0x10] sm:$0xff] %vm670, %v1457
        %1462 = vst.msk [vmem:[%s654 + $0x18] sm:$0xff] %vm670, %v1458
        %s1463 = sand.u32 %s426, 1
        %s1464 = scalar_lea.sflag [#allocation4], %s1463
        %s1465 = sand.u32 %s426, 1
        %s1466 = smul.addr %s1465, 32
        %s1467 = scalar_lea.vmem [#allocation11], %s1466
        // Predicated region
        $region113: #{tpu_custom_call.1} parent=91 // pred_check
          %p1468 = pneg %p436
        $region114: #{tpu_custom_call.1} parent=91 // pred_check_branch
          %1470 = sbr.rel (%p1468) target = $region116
        $region115: #{tpu_custom_call.1} parent=91 // pred_region
          %s1471 = smul.u32 2, %s35
          %1473 = vsyncadd %s1464, 0
          %s1474 = smul.addr %s1471, 2
          %s1475 = smul.addr %s1474, 8
          %s1476 = scalar_lea.hbm %s18, %s1475
          %s1477 = sshll.u32 %s1467, 4
          %s1478 = int_to_ptr.vmem [resolvable:$true] %s1477
          %s1479 = sshll.u32 %s1476, 4
          %s1480 = int_to_ptr.hbm [resolvable:$true] %s1479
          %1485 = dma.vmem_to_hbm [thread:$0]  %s1478, 512, %s1480, %s1464, 128, 128, 8
        $region116: #{tpu_custom_call.1} parent=91 // pred_fallthru
          _
      $region92: #{tpu_custom_call.1} parent=5 // pred_fallthru
        _
      %p1486 = scmp.le.s32.totalorder 2, %s30
      // Predicated region
      $region117: #{tpu_custom_call.1} parent=5 // pred_check
        %p1487 = pneg %p1486
      $region118: #{tpu_custom_call.1} parent=5 // pred_check_branch
        %1489 = sbr.rel (%p1487) target = $region120
      $region119: #{tpu_custom_call.1} parent=5 // pred_region
        %s1490 = ssub.s32 %s30, 2
        // Predicated region
        $region121: #{tpu_custom_call.1} parent=119 // pred_check
          %p1491 = pneg %p442
        $region122: #{tpu_custom_call.1} parent=119 // pred_check_branch
          %1493 = sbr.rel (%p1491) target = $region124
        $region123: #{tpu_custom_call.1} parent=119 // pred_region
          %s1494 = sand.u32 %s427, 1
          %s1495 = scalar_lea.sflag [#allocation4], %s1494
          %s1496 = sand.u32 %s427, 1
          %s1497 = smul.addr %s1496, 32
          %s1498 = scalar_lea.vmem [#allocation11], %s1497
          %1500 = dma.done %s1495, 512
        $region124: #{tpu_custom_call.1} parent=119 // pred_fallthru
          _
      $region120: #{tpu_custom_call.1} parent=5 // pred_fallthru
        _
    $region6: #{tpu_custom_call.1} parent=1 // loop_footer
      %s34 = sadd.s32 1, %s30
    $region7: #{tpu_custom_call.1} parent=1 // loop_footer_branch
      %29 = sbr.rel target = $region3
    $region8: #{tpu_custom_call.1} parent=1 // loop_exit
      _
    %1501 = vsyncpa [#allocation3], 1
    %s1502 = scalar_lea.sflag [#allocation3], 1
    %1503 = vsyncpa %s1502, 1
    %1504 = vsyncpa [#allocation6], 1
    %1505 = vsyncpa [#allocation9], 1
    %1506 = vsyncpa [#allocation4], 1
    %s1507 = scalar_lea.sflag [#allocation4], 1
    %1508 = vsyncpa %s1507, 1

</llo_original>
